<compile_context>
chip_gen: v7x
topology: tpu7x:2x2x1
jax: 0.10.0
libtpu: 0.0.40
codegen_flags: <defaults>
</compile_context>

<pallas_src>
import functools

import jax
import jax.numpy as jnp
from jax import lax
from jax.experimental import pallas as pl
from jax.experimental.pallas import tpu as pltpu


def _posneg_conv_kernel(xs_ref, w_ref, b_ref, o_ref, *, KH, KW, stride, th, Wo):
    """One (batch, row-block) step: in-VMEM im2col + one fused MXU matmul."""
    x = xs_ref[...]                                      # [slab_rows, Wp, Cin]
    # clamp(x, min=0) and clamp(x, max=0), concatenated along channels.
    xc = jnp.concatenate([jnp.maximum(x, 0.0), jnp.minimum(x, 0.0)], axis=-1)

    pieces = []
    for i in range(KH):
        for j in range(KW):
            if stride == 1:
                pieces.append(xc[i:i + th, j:j + Wo, :])
            else:
                pieces.append(lax.slice(
                    xc,
                    (i, j, 0),
                    (i + (th - 1) * stride + 1,
                     j + (Wo - 1) * stride + 1,
                     xc.shape[-1]),
                    (stride, stride, 1)))
    patches = jnp.concatenate(pieces, axis=-1)           # [th, Wo, 2*K]
    patches = patches.reshape(th * Wo, -1)               # [tile_m, 2*K]

    acc = jnp.dot(patches, w_ref[...], preferred_element_type=jnp.float32)
    acc = acc + b_ref[...]                               # broadcast [1, Cout_pad]
    o_ref[...] = acc.reshape(th, Wo, -1).astype(o_ref.dtype)


def posnet_conv(x, weight, bias, *, stride=1, padding=1, ignorebias=False,
                tile_m=512):
    """PosNetConv forward: posconv(clamp(x,min=0)) + negconv(clamp(x,max=0)).

    x: [B, Cin, H, W] (NCHW like PyTorch), weight: [Cout, Cin, KH, KW], bias: [Cout].
    """
    # TODO(synk): dilation != 1 and groups != 1 (carried by the cloned conv) are
    # not implemented; this covers the standard dense-conv case.
    B, Cin, H, W = x.shape
    Cout, _, KH, KW = weight.shape
    K = Cin * KH * KW

    Ho = (H + 2 * padding - KH) // stride + 1
    Wo = (W + 2 * padding - KW) // stride + 1

    # Row-block size: aim for ~tile_m output pixels per grid step.
    th = min(Ho, max(1, tile_m // max(Wo, 1)))
    n_hb = pl.cdiv(Ho, th)
    Ho_pad = n_hb * th
    slab_rows = (th - 1) * stride + KH              # input rows per block (w/ halo)
    rows_needed = (Ho_pad - 1) * stride + KH

    # NHWC + zero padding (conv padding + extra bottom rows for the H blocking).
    x_nhwc = jnp.transpose(x, (0, 2, 3, 1))
    pad_bottom = padding + max(0, rows_needed - (H + 2 * padding))
    xp = jnp.pad(x_nhwc, ((0, 0), (padding, pad_bottom),
                          (padding, padding), (0, 0)))
    Wp = W + 2 * padding

    # Non-overlapping row-slabs with a (KH-1)*stride-ish halo:
    # [B, n_hb, slab_rows, Wp, Cin]  (~(1 + (KH-1)/th)x the input, NOT KH*KW x).
    row_idx = (jnp.arange(n_hb)[:, None] * (th * stride)
               + jnp.arange(slab_rows)[None, :])
    xslab = jnp.take(xp, row_idx, axis=1)

    # Fused pos/neg weight matrix, Cout padded to a lane-dense multiple of 128.
    # Row order of the contraction axis: ((i*KW + j)*2 + sign)*Cin + c, which
    # matches the per-tap [pos-channels, neg-channels] concat in the kernel.
    Cout_pad = ((Cout + 127) // 128) * 128
    w_hw = jnp.transpose(weight, (2, 3, 1, 0))            # [KH, KW, Cin, Cout]
    w_cat = jnp.stack([jnp.maximum(w_hw, 0.0), jnp.minimum(w_hw, 0.0)], axis=2)
    w_cat = w_cat.reshape(KH * KW * 2 * Cin, Cout)
    w_cat = jnp.pad(w_cat, ((0, 0), (0, Cout_pad - Cout))).astype(x.dtype)

    if ignorebias or bias is None:
        b_vec = jnp.zeros((Cout,), x.dtype)
    else:
        b_vec = bias.astype(x.dtype)     # clamp(b,min=0) + clamp(b,max=0) == b
    b_vec = jnp.pad(b_vec, (0, Cout_pad - Cout)).reshape(1, Cout_pad)

    kernel = functools.partial(_posneg_conv_kernel, KH=KH, KW=KW,
                               stride=stride, th=th, Wo=Wo)

    out = pl.pallas_call(
        kernel,
        out_shape=jax.ShapeDtypeStruct((B, Ho_pad, Wo, Cout_pad), x.dtype),
        grid_spec=pltpu.PrefetchScalarGridSpec(
            num_scalar_prefetch=0,
            grid=(B, n_hb),
            in_specs=[
                # input row-slab for this (batch, row-block)
                pl.BlockSpec((None, None, slab_rows, Wp, Cin),
                             lambda b, h: (b, h, 0, 0, 0)),
                # fused pos/neg weights (resident, constant index_map)
                # NOTE: for very large layers (2*K*Cout_pad*4 >> ~16 MiB, e.g.
                # on v7x's 64 MiB VMEM) add a Cout/K grid axis instead.
                pl.BlockSpec((2 * K, Cout_pad), lambda b, h: (0, 0)),
                # bias (resident)
                pl.BlockSpec((1, Cout_pad), lambda b, h: (0, 0)),
            ],
            out_specs=pl.BlockSpec((None, th, Wo, Cout_pad),
                                   lambda b, h: (b, h, 0, 0)),
        ),
        compiler_params=pltpu.CompilerParams(
            dimension_semantics=("parallel", "parallel")),
    )(xslab, w_cat, b_vec)

    out = out[:, :Ho, :, :Cout]                   # drop H-blocking / Cout padding
    return jnp.transpose(out, (0, 3, 1, 2))       # back to NCHW (module semantics)


def _reference(x, weight, bias, *, stride=1, padding=1, ignorebias=False):
    """Pure-JAX reference mirroring the PyTorch module."""
    dn = lax.conv_dimension_numbers(x.shape, weight.shape, ('NCHW', 'OIHW', 'NCHW'))
    w_pos = jnp.maximum(weight, 0.0)
    w_neg = jnp.minimum(weight, 0.0)
    vp = lax.conv_general_dilated(jnp.maximum(x, 0.0), w_pos, (stride, stride),
                                  ((padding, padding), (padding, padding)),
                                  dimension_numbers=dn)
    vn = lax.conv_general_dilated(jnp.minimum(x, 0.0), w_neg, (stride, stride),
                                  ((padding, padding), (padding, padding)),
                                  dimension_numbers=dn)
    out = vp + vn
    if not ignorebias and bias is not None:
        out = out + jnp.maximum(bias, 0.0).reshape(1, -1, 1, 1)
        out = out + jnp.minimum(bias, 0.0).reshape(1, -1, 1, 1)
    return out


if __name__ == "__main__":
    key = jax.random.PRNGKey(0)
    kx, kw, kb = jax.random.split(key, 3)

    # Small shapes consistent with the module: NCHW input, 3x3 conv, pad=1.
    B, Cin, H, W = 2, 4, 16, 16
    Cout, KH, KW = 8, 3, 3

    x = jax.random.normal(kx, (B, Cin, H, W), jnp.float32)
    weight = jax.random.normal(kw, (Cout, Cin, KH, KW), jnp.float32) * 0.1
    bias = jax.random.normal(kb, (Cout,), jnp.float32) * 0.1

    out = posnet_conv(x, weight, bias, stride=1, padding=1, ignorebias=False)
    out = jax.block_until_ready(out)

    ref = _reference(x, weight, bias, stride=1, padding=1, ignorebias=False)
    assert out.shape == ref.shape == (B, Cout, H, W)
    assert jnp.allclose(out, ref, atol=1e-4, rtol=1e-4), \
        float(jnp.max(jnp.abs(out - ref)))

    print("KERNEL_OK")
</pallas_src>

<mosaic_0001>
module attributes {stable_mosaic.version = 11 : i64} {
  func.func @_posneg_conv_kernel(%arg0: i32, %arg1: i32, %arg2: memref<1x1x18x18x4xf32, #tpu.memory_space<vmem>>, %arg3: memref<72x128xf32, #tpu.memory_space<vmem>>, %arg4: memref<1x128xf32, #tpu.memory_space<vmem>>, %arg5: memref<1x16x16x128xf32, #tpu.memory_space<vmem>>) attributes {dimension_semantics = [#tpu.dimension_semantics<parallel>, #tpu.dimension_semantics<parallel>], iteration_bounds = array<i64: 2, 1>, scalar_prefetch = 0 : i64, scratch_operands = 0 : i64, tpu.core_type = #tpu.core_type<tc>, window_params = [{transform_indices = @transform_0, window_bounds = array<i64: 1, 1, 18, 18, 4>}, {pipeline_mode = #tpu.pipeline_mode<synchronous>, transform_indices = @transform_1, window_bounds = array<i64: 72, 128>}, {pipeline_mode = #tpu.pipeline_mode<synchronous>, transform_indices = @transform_2, window_bounds = array<i64: 1, 128>}, {transform_indices = @transform_3, window_bounds = array<i64: 1, 16, 16, 128>}]} {
    %c0 = arith.constant 0 : index
    %c0_0 = arith.constant 0 : index
    %c0_1 = arith.constant 0 : index
    %c0_2 = arith.constant 0 : index
    %c0_3 = arith.constant 0 : index
    %0 = vector.load %arg2[%c0, %c0_0, %c0_1, %c0_2, %c0_3] : memref<1x1x18x18x4xf32, #tpu.memory_space<vmem>>, vector<1x1x18x18x4xf32>
    %1 = vector.shape_cast %0 : vector<1x1x18x18x4xf32> to vector<18x18x4xf32>
    %cst = arith.constant 0.000000e+00 : f32
    %2 = vector.broadcast %cst : f32 to vector<18x18x4xf32>
    %3 = arith.maximumf %1, %2 : vector<18x18x4xf32>
    %cst_4 = arith.constant 0.000000e+00 : f32
    %4 = vector.broadcast %cst_4 : f32 to vector<18x18x4xf32>
    %5 = arith.minimumf %1, %4 : vector<18x18x4xf32>
    %6 = tpu.concatenate %3, %5 in 2 : vector<18x18x4xf32>, vector<18x18x4xf32> -> vector<18x18x8xf32>
    %7 = vector.extract_strided_slice %6 {offsets = [0, 0, 0], sizes = [16, 16, 8], strides = [1, 1, 1]} : vector<18x18x8xf32> to vector<16x16x8xf32>
    %8 = vector.extract_strided_slice %6 {offsets = [0, 1, 0], sizes = [16, 16, 8], strides = [1, 1, 1]} : vector<18x18x8xf32> to vector<16x16x8xf32>
    %9 = vector.extract_strided_slice %6 {offsets = [0, 2, 0], sizes = [16, 16, 8], strides = [1, 1, 1]} : vector<18x18x8xf32> to vector<16x16x8xf32>
    %10 = vector.extract_strided_slice %6 {offsets = [1, 0, 0], sizes = [16, 16, 8], strides = [1, 1, 1]} : vector<18x18x8xf32> to vector<16x16x8xf32>
    %11 = vector.extract_strided_slice %6 {offsets = [1, 1, 0], sizes = [16, 16, 8], strides = [1, 1, 1]} : vector<18x18x8xf32> to vector<16x16x8xf32>
    %12 = vector.extract_strided_slice %6 {offsets = [1, 2, 0], sizes = [16, 16, 8], strides = [1, 1, 1]} : vector<18x18x8xf32> to vector<16x16x8xf32>
    %13 = vector.extract_strided_slice %6 {offsets = [2, 0, 0], sizes = [16, 16, 8], strides = [1, 1, 1]} : vector<18x18x8xf32> to vector<16x16x8xf32>
    %14 = vector.extract_strided_slice %6 {offsets = [2, 1, 0], sizes = [16, 16, 8], strides = [1, 1, 1]} : vector<18x18x8xf32> to vector<16x16x8xf32>
    %15 = vector.extract_strided_slice %6 {offsets = [2, 2, 0], sizes = [16, 16, 8], strides = [1, 1, 1]} : vector<18x18x8xf32> to vector<16x16x8xf32>
    %16 = tpu.concatenate %7, %8, %9, %10, %11, %12, %13, %14, %15 in 2 : vector<16x16x8xf32>, vector<16x16x8xf32>, vector<16x16x8xf32>, vector<16x16x8xf32>, vector<16x16x8xf32>, vector<16x16x8xf32>, vector<16x16x8xf32>, vector<16x16x8xf32>, vector<16x16x8xf32> -> vector<16x16x72xf32>
    %17 = vector.shape_cast %16 : vector<16x16x72xf32> to vector<256x72xf32>
    %c0_5 = arith.constant 0 : index
    %c0_6 = arith.constant 0 : index
    %18 = vector.load %arg3[%c0_5, %c0_6] : memref<72x128xf32, #tpu.memory_space<vmem>>, vector<72x128xf32>
    %cst_7 = arith.constant dense<0.000000e+00> : vector<256x128xf32>
    %19 = tpu.matmul %17, %18, %cst_7 {dimension_numbers = #tpu.dot_dimension_numbers<[1], [0], [0], [1], [0, 0, 1, 1], [], []>} : vector<256x72xf32>, vector<72x128xf32>, vector<256x128xf32> -> vector<256x128xf32>
    %c0_8 = arith.constant 0 : index
    %c0_9 = arith.constant 0 : index
    %20 = vector.load %arg4[%c0_8, %c0_9] : memref<1x128xf32, #tpu.memory_space<vmem>>, vector<1x128xf32>
    %21 = vector.broadcast %20 : vector<1x128xf32> to vector<256x128xf32>
    %22 = arith.addf %19, %21 : vector<256x128xf32>
    %23 = vector.shape_cast %22 : vector<256x128xf32> to vector<16x16x128xf32>
    %c0_10 = arith.constant 0 : index
    %c0_11 = arith.constant 0 : index
    %c0_12 = arith.constant 0 : index
    %c0_13 = arith.constant 0 : index
    %24 = vector.load %arg5[%c0_10, %c0_11, %c0_12, %c0_13] : memref<1x16x16x128xf32, #tpu.memory_space<vmem>>, vector<1x16x16x128xf32>
    %25 = vector.shape_cast %24 : vector<1x16x16x128xf32> to vector<16x16x128xf32>
    %26 = vector.shape_cast %23 : vector<16x16x128xf32> to vector<1x16x16x128xf32>
    tpu.vector_store %arg5[%c0_10, %c0_11, %c0_12, %c0_13], %26 {strides = array<i32>} : memref<1x16x16x128xf32, #tpu.memory_space<vmem>>, vector<1x16x16x128xf32>,
    return
  }
  func.func @transform_0(%arg0: i32, %arg1: i32) -> (i32, i32, i32, i32, i32) {
    %c0_i32 = arith.constant 0 : i32
    %c0_i32_0 = arith.constant 0 : i32
    %c0_i32_1 = arith.constant 0 : i32
    %c0_i32_2 = arith.constant 0 : i32
    return %arg0, %arg1, %c0_i32, %c0_i32_0, %c0_i32_1 : i32, i32, i32, i32, i32
  }
  func.func @transform_1(%arg0: i32, %arg1: i32) -> (i32, i32) {
    %c0_i32 = arith.constant 0 : i32
    %c0_i32_0 = arith.constant 0 : i32
    %c0_i32_1 = arith.constant 0 : i32
    return %c0_i32, %c0_i32_0 : i32, i32
  }
  func.func @transform_2(%arg0: i32, %arg1: i32) -> (i32, i32) {
    %c0_i32 = arith.constant 0 : i32
    %c0_i32_0 = arith.constant 0 : i32
    %c0_i32_1 = arith.constant 0 : i32
    return %c0_i32, %c0_i32_0 : i32, i32
  }
  func.func @transform_3(%arg0: i32, %arg1: i32) -> (i32, i32, i32, i32) {
    %c0_i32 = arith.constant 0 : i32
    %c0_i32_0 = arith.constant 0 : i32
    %c0_i32_1 = arith.constant 0 : i32
    return %arg0, %arg1, %c0_i32, %c0_i32_0 : i32, i32, i32, i32
  }
}

</mosaic_0001>

<llo_original>
// kernel: tpu_custom_call.1
$region0: #{tpu_custom_call.1}
  #allocation0 [shape = 'u32[]', space=smem, size = 0x4, offset = 0x4, fixed_abs, tag = 'smem constant byte address 0x4 - core index']
  #allocation1 [shape = 'u32[144,128]{1,0:T(1,128)}', space=vmem, size = 0x12000, scoped, tag = 'internal scratch']
  %s0 = inlined_call_operand.vmem [shape: f32[2,1,18,18,4], index: 0, kind: input, shape index: {}]
  %s1 = inlined_call_operand.vmem [shape: f32[72,128], index: 1, kind: input, shape index: {}]
  %s2 = inlined_call_operand.vmem [shape: f32[1,128], index: 2, kind: input, shape index: {}]
  %s3 = inlined_call_operand.hbm [shape: f32[2,16,16,128], index: 3, kind: output, shape index: {}]
  %s4 = sld [smem:[#allocation0]]
  $region45: #{tpu_custom_call.1} parent=0
    _
  %s6 = ssub.s32 1, %s4
  %s7 = scalar_select 0, %s6, %s4
  $region1: #{tpu_custom_call.1} parent=0
    #allocation2 [shape = 'u8[262144]{0}', space=vmem, size = 0x40000, scoped, tag = 'output window, operand 0']
    #allocation3 [shape = 's32[2]{0}', space=sflag, size = 0x8, scoped, tag = 'scoped memory for tpu_custom_call.1']
    %8 = vsyncpa [#allocation3], 0
    %s9 = scalar_lea.sflag [#allocation3], 1
    %10 = vsyncpa %s9, 0
    loop: start=0, step=1, limit=4
    $region2: #{tpu_custom_call.1} parent=1 // loop_pre_header
      _
    $region3: #{tpu_custom_call.1} parent=1 // loop_header
      %s12 = sphi 0, %s16
      %p13 = scmp.ge.s32.totalorder %s12, 4
      %s19 = sphi 0, %s31
      %s20 = sphi 0, %s27
      %s21 = sphi 0, %s19
      %s22 = sphi 0, %s20
      %s23 = sphi 0, %s21
      %s24 = sphi 0, %s22
      %s36 = sphi 0, %s38
      %s39 = sphi 0, %s36
      %s40 = sphi 0, %s39
      %s56 = sphi 0, %s40
      %s60 = sphi 0, %s60
      %s62 = sphi 0, %s60
      %s63 = sphi 0, %s62
      %s77 = sphi 0, %s63
      %s81 = sphi 0, %s81
      %s83 = sphi 0, %s81
      %s84 = sphi 0, %s83
      %s98 = sphi 0, %s84
      %s106 = sphi 0, %s108
      %s109 = sphi 0, %s106
      %s110 = sphi 0, %s109
      %s126 = sphi 0, %s110
    $region4: #{tpu_custom_call.1} parent=1 // loop_header_branch
      %15 = sbr.rel (%p13) target = $region8
    $region5: #{tpu_custom_call.1} parent=1 // loop_body
      %s17 = ssub.s32 %s12, 1
      %s18 = ssub.s32 %s12, 2
      %s25 = sadd.s32 1, %s20
      %p26 = scmp.ge.s32.totalorder %s25, 1
      %s27 = scalar_select %p26, 0, %s25
      %s28 = sadd.s32 1, %s19
      %s29 = scalar_select %p26, %s28, %s19
      %p30 = scmp.ge.s32.totalorder %s29, 2
      %s31 = scalar_select %p30, 0, %s29
      %s32 = ssub.s32 %s19, %s31
      %s33 = ssub.s32 %s20, %s27
      %s34 = sor.u32 %s32, %s33
      %p35 = scmp.eq.s32.totalorder %s34, 0
      %s37 = sadd.s32 %s36, 1
      %s38 = scalar_select %p35, %s36, %s37
      %p41 = pneg %p35
      %p42 = scmp.eq.s32.totalorder %s12, 1
      %p43 = por %p41, %p42
      %p44 = scmp.ne.s32.totalorder %s36, %s39
      %p45 = scmp.eq.s32.totalorder %s12, 0
      %p46 = por %p44, %p45
      %p47 = scmp.ne.s32.totalorder %s36, %s39
      %p48 = scmp.eq.s32.totalorder %s17, 1
      %p49 = por %p47, %p48
      %p50 = scmp.ne.s32.totalorder %s39, %s40
      %p51 = scmp.eq.s32.totalorder %s17, 0
      %p52 = por %p50, %p51
      %p53 = scmp.ne.s32.totalorder %s39, %s40
      %p54 = scmp.eq.s32.totalorder %s18, 1
      %p55 = por %p53, %p54
      %p57 = scmp.ne.s32.totalorder %s40, %s56
      %p58 = scmp.eq.s32.totalorder %s18, 0
      %p59 = por %p57, %p58
      %s61 = sadd.s32 %s60, 1
      %p64 = scmp.eq.s32.totalorder %s12, 1
      %p65 = scmp.ne.s32.totalorder %s60, %s62
      %p66 = scmp.eq.s32.totalorder %s12, 0
      %p67 = por %p65, %p66
      %p68 = scmp.ne.s32.totalorder %s60, %s62
      %p69 = scmp.eq.s32.totalorder %s17, 1
      %p70 = por %p68, %p69
      %p71 = scmp.ne.s32.totalorder %s62, %s63
      %p72 = scmp.eq.s32.totalorder %s17, 0
      %p73 = por %p71, %p72
      %p74 = scmp.ne.s32.totalorder %s62, %s63
      %p75 = scmp.eq.s32.totalorder %s18, 1
      %p76 = por %p74, %p75
      %p78 = scmp.ne.s32.totalorder %s63, %s77
      %p79 = scmp.eq.s32.totalorder %s18, 0
      %p80 = por %p78, %p79
      %s82 = sadd.s32 %s81, 1
      %p85 = scmp.eq.s32.totalorder %s12, 1
      %p86 = scmp.ne.s32.totalorder %s81, %s83
      %p87 = scmp.eq.s32.totalorder %s12, 0
      %p88 = por %p86, %p87
      %p89 = scmp.ne.s32.totalorder %s81, %s83
      %p90 = scmp.eq.s32.totalorder %s17, 1
      %p91 = por %p89, %p90
      %p92 = scmp.ne.s32.totalorder %s83, %s84
      %p93 = scmp.eq.s32.totalorder %s17, 0
      %p94 = por %p92, %p93
      %p95 = scmp.ne.s32.totalorder %s83, %s84
      %p96 = scmp.eq.s32.totalorder %s18, 1
      %p97 = por %p95, %p96
      %p99 = scmp.ne.s32.totalorder %s84, %s98
      %p100 = scmp.eq.s32.totalorder %s18, 0
      %p101 = por %p99, %p100
      %s102 = ssub.s32 %s19, %s31
      %s103 = ssub.s32 %s20, %s27
      %s104 = sor.u32 %s102, %s103
      %p105 = scmp.eq.s32.totalorder %s104, 0
      %s107 = sadd.s32 %s106, 1
      %s108 = scalar_select %p105, %s106, %s107
      %p111 = pneg %p105
      %p112 = scmp.eq.s32.totalorder %s12, 1
      %p113 = por %p111, %p112
      %p114 = scmp.ne.s32.totalorder %s106, %s109
      %p115 = scmp.eq.s32.totalorder %s12, 0
      %p116 = por %p114, %p115
      %p117 = scmp.ne.s32.totalorder %s106, %s109
      %p118 = scmp.eq.s32.totalorder %s17, 1
      %p119 = por %p117, %p118
      %p120 = scmp.ne.s32.totalorder %s109, %s110
      %p121 = scmp.eq.s32.totalorder %s17, 0
      %p122 = por %p120, %p121
      %p123 = scmp.ne.s32.totalorder %s109, %s110
      %p124 = scmp.eq.s32.totalorder %s18, 1
      %p125 = por %p123, %p124
      %p127 = scmp.ne.s32.totalorder %s110, %s126
      %p128 = scmp.eq.s32.totalorder %s18, 0
      %p129 = por %p127, %p128
      %p130 = scmp.le.s32.totalorder 1, %s12
      %p131 = scmp.lt.s32.totalorder %s12, 3
      %p132 = pnand %p130, %p131
      %p133 = pneg %p132
      // Predicated region
      $region9: #{tpu_custom_call.1} parent=5 // pred_check
        _
      $region10: #{tpu_custom_call.1} parent=5 // pred_check_branch
        %135 = sbr.rel (%p132) target = $region12
      $region11: #{tpu_custom_call.1} parent=5 // pred_region
        %s136 = ssub.s32 %s12, 1
        // Predicated region
        $region13: #{tpu_custom_call.1} parent=11 // pred_check
          %p137 = pneg %p73
        $region14: #{tpu_custom_call.1} parent=11 // pred_check_branch
          %139 = sbr.rel (%p137) target = $region16
        $region15: #{tpu_custom_call.1} parent=11 // pred_region
          _
        $region16: #{tpu_custom_call.1} parent=11 // pred_fallthru
          _
        // Predicated region
        $region17: #{tpu_custom_call.1} parent=11 // pred_check
          %p140 = pneg %p94
        $region18: #{tpu_custom_call.1} parent=11 // pred_check_branch
          %142 = sbr.rel (%p140) target = $region20
        $region19: #{tpu_custom_call.1} parent=11 // pred_region
          _
        $region20: #{tpu_custom_call.1} parent=11 // pred_fallthru
          _
      $region12: #{tpu_custom_call.1} parent=5 // pred_fallthru
        _
      %p143 = scmp.lt.s32.totalorder %s12, 2
      // Predicated region
      $region21: #{tpu_custom_call.1} parent=5 // pred_check
        %p144 = pneg %p143
      $region22: #{tpu_custom_call.1} parent=5 // pred_check_branch
        %146 = sbr.rel (%p144) target = $region24
      $region23: #{tpu_custom_call.1} parent=5 // pred_region
        // Predicated region
        $region25: #{tpu_custom_call.1} parent=23 // pred_check
          %p147 = pneg %p46
        $region26: #{tpu_custom_call.1} parent=23 // pred_check_branch
          %149 = sbr.rel (%p147) target = $region28
        $region27: #{tpu_custom_call.1} parent=23 // pred_region
          %p150 = scmp.lt.s32.totalorder %s19, 1
          %s151 = scalar_select %p150, %s19, 1
          %p152 = scmp.lt.s32.totalorder %s20, 0
          %s153 = scalar_select %p152, %s20, 0
          %s154 = smul.addr %s153, 54
          %s155 = smul.addr %s151, 54
          %s156 = sadd.s32 %s154, %s155
          %s157 = smul.addr %s156, 8
          %s158 = scalar_lea.vmem %s0, %s157
        $region28: #{tpu_custom_call.1} parent=23 // pred_fallthru
          _
      $region24: #{tpu_custom_call.1} parent=5 // pred_fallthru
        _
      %p159 = scmp.le.s32.totalorder 1, %s12
      %p160 = scmp.lt.s32.totalorder %s12, 3
      %p161 = pnand %p159, %p160
      %p162 = pneg %p161
      // Predicated region
      $region29: #{tpu_custom_call.1} parent=5 // pred_check
        _
      $region30: #{tpu_custom_call.1} parent=5 // pred_check_branch
        %164 = sbr.rel (%p161) target = $region32
      $region31: #{tpu_custom_call.1} parent=5 // pred_region
        %s165 = ssub.s32 %s12, 1
        %p166 = scmp.lt.s32.totalorder %s21, 1
        %s167 = scalar_select %p166, %s21, 1
        %p168 = scmp.lt.s32.totalorder %s22, 0
        %s169 = scalar_select %p168, %s22, 0
        %s170 = smul.addr %s169, 54
        %s171 = smul.addr %s167, 54
        %s172 = sadd.s32 %s170, %s171
        %s173 = smul.addr %s172, 8
        %s174 = scalar_lea.vmem %s0, %s173
        %p175 = pneg %p52
        %p176 = pneg %p49
        %p177 = pneg %p73
        %p178 = pneg %p70
        %p179 = pneg %p94
        %p180 = pneg %p91
        %p181 = pneg %p122
        %p182 = pneg %p119
        %s183 = sand.u32 %s109, 1
        %s184 = scalar_lea.sflag [#allocation3], %s183
        %s185 = sand.u32 %s109, 1
        %s186 = smul.addr %s185, 256
        %s187 = scalar_lea.vmem [#allocation2], %s186
        %p188 = scmp.lt.s32.totalorder %s21, 1
        %s189 = scalar_select %p188, %s21, 1
        %p190 = scmp.lt.s32.totalorder %s22, 0
        %s191 = scalar_select %p190, %s22, 0
        %s192 = smul.addr %s191, 54
        %s193 = smul.addr %s189, 54
        %s194 = sadd.s32 %s192, %s193
        %s195 = smul.addr %s194, 8
        %s196 = scalar_lea.vmem %s0, %s195
        %s197 = smul.u32 16, %s22
        %v198 = vld [vmem:[%s196] sm:$0xff]
        %v199 = vld [vmem:[%s196 + $0x8] sm:$0xff]
        %v200 = vld [vmem:[%s196 + $0x10] sm:$0x3]
        %v201 = vld [vmem:[%s196 + $0x18] sm:$0xff]
        %v202 = vld [vmem:[%s196 + $0x20] sm:$0xff]
        %v203 = vld [vmem:[%s196 + $0x28] sm:$0x3]
        %v204 = vld [vmem:[%s196 + $0x30] sm:$0xff]
        %v205 = vld [vmem:[%s196 + $0x38] sm:$0xff]
        %v206 = vld [vmem:[%s196 + $0x40] sm:$0x3]
        %v207 = vld [vmem:[%s196 + $0x48] sm:$0xff]
        %v208 = vld [vmem:[%s196 + $0x50] sm:$0xff]
        %v209 = vld [vmem:[%s196 + $0x58] sm:$0x3]
        %v210 = vld [vmem:[%s196 + $0x60] sm:$0xff]
        %v211 = vld [vmem:[%s196 + $0x68] sm:$0xff]
        %v212 = vld [vmem:[%s196 + $0x70] sm:$0x3]
        %v213 = vld [vmem:[%s196 + $0x78] sm:$0xff]
        %v214 = vld [vmem:[%s196 + $0x80] sm:$0xff]
        %v215 = vld [vmem:[%s196 + $0x88] sm:$0x3]
        %v216 = vld [vmem:[%s196 + $0x90] sm:$0xff]
        %v217 = vld [vmem:[%s196 + $0x98] sm:$0xff]
        %v218 = vld [vmem:[%s196 + $0xa0] sm:$0x3]
        %v219 = vld [vmem:[%s196 + $0xa8] sm:$0xff]
        %v220 = vld [vmem:[%s196 + $0xb0] sm:$0xff]
        %v221 = vld [vmem:[%s196 + $0xb8] sm:$0x3]
        %v222 = vld [vmem:[%s196 + $0xc0] sm:$0xff]
        %v223 = vld [vmem:[%s196 + $0xc8] sm:$0xff]
        %v224 = vld [vmem:[%s196 + $0xd0] sm:$0x3]
        %v225 = vld [vmem:[%s196 + $0xd8] sm:$0xff]
        %v226 = vld [vmem:[%s196 + $0xe0] sm:$0xff]
        %v227 = vld [vmem:[%s196 + $0xe8] sm:$0x3]
        %v228 = vld [vmem:[%s196 + $0xf0] sm:$0xff]
        %v229 = vld [vmem:[%s196 + $0xf8] sm:$0xff]
        %v230 = vld [vmem:[%s196 + $0x100] sm:$0x3]
        %v231 = vld [vmem:[%s196 + $0x108] sm:$0xff]
        %v232 = vld [vmem:[%s196 + $0x110] sm:$0xff]
        %v233 = vld [vmem:[%s196 + $0x118] sm:$0x3]
        %v234 = vld [vmem:[%s196 + $0x120] sm:$0xff]
        %v235 = vld [vmem:[%s196 + $0x128] sm:$0xff]
        %v236 = vld [vmem:[%s196 + $0x130] sm:$0x3]
        %v237 = vld [vmem:[%s196 + $0x138] sm:$0xff]
        %v238 = vld [vmem:[%s196 + $0x140] sm:$0xff]
        %v239 = vld [vmem:[%s196 + $0x148] sm:$0x3]
        %v240 = vld [vmem:[%s196 + $0x150] sm:$0xff]
        %v241 = vld [vmem:[%s196 + $0x158] sm:$0xff]
        %v242 = vld [vmem:[%s196 + $0x160] sm:$0x3]
        %v243 = vld [vmem:[%s196 + $0x168] sm:$0xff]
        %v244 = vld [vmem:[%s196 + $0x170] sm:$0xff]
        %v245 = vld [vmem:[%s196 + $0x178] sm:$0x3]
        %v246 = vld [vmem:[%s196 + $0x180] sm:$0xff]
        %v247 = vld [vmem:[%s196 + $0x188] sm:$0xff]
        %v248 = vld [vmem:[%s196 + $0x190] sm:$0x3]
        %v249 = vld [vmem:[%s196 + $0x198] sm:$0xff]
        %v250 = vld [vmem:[%s196 + $0x1a0] sm:$0xff]
        %v251 = vld [vmem:[%s196 + $0x1a8] sm:$0x3]
        %v252 = vmax.f32 %v198, 0.0
        %v253 = vmax.f32 %v199, 0.0
        %v254 = vmax.f32 %v200, 0.0
        %v255 = vmax.f32 %v201, 0.0
        %v256 = vmax.f32 %v202, 0.0
        %v257 = vmax.f32 %v203, 0.0
        %v258 = vmax.f32 %v204, 0.0
        %v259 = vmax.f32 %v205, 0.0
        %v260 = vmax.f32 %v206, 0.0
        %v261 = vmax.f32 %v207, 0.0
        %v262 = vmax.f32 %v208, 0.0
        %v263 = vmax.f32 %v209, 0.0
        %v264 = vmax.f32 %v210, 0.0
        %v265 = vmax.f32 %v211, 0.0
        %v266 = vmax.f32 %v212, 0.0
        %v267 = vmax.f32 %v213, 0.0
        %v268 = vmax.f32 %v214, 0.0
        %v269 = vmax.f32 %v215, 0.0
        %v270 = vmax.f32 %v216, 0.0
        %v271 = vmax.f32 %v217, 0.0
        %v272 = vmax.f32 %v218, 0.0
        %v273 = vmax.f32 %v219, 0.0
        %v274 = vmax.f32 %v220, 0.0
        %v275 = vmax.f32 %v221, 0.0
        %v276 = vmax.f32 %v222, 0.0
        %v277 = vmax.f32 %v223, 0.0
        %v278 = vmax.f32 %v224, 0.0
        %v279 = vmax.f32 %v225, 0.0
        %v280 = vmax.f32 %v226, 0.0
        %v281 = vmax.f32 %v227, 0.0
        %v282 = vmax.f32 %v228, 0.0
        %v283 = vmax.f32 %v229, 0.0
        %v284 = vmax.f32 %v230, 0.0
        %v285 = vmax.f32 %v231, 0.0
        %v286 = vmax.f32 %v232, 0.0
        %v287 = vmax.f32 %v233, 0.0
        %v288 = vmax.f32 %v234, 0.0
        %v289 = vmax.f32 %v235, 0.0
        %v290 = vmax.f32 %v236, 0.0
        %v291 = vmax.f32 %v237, 0.0
        %v292 = vmax.f32 %v238, 0.0
        %v293 = vmax.f32 %v239, 0.0
        %v294 = vmax.f32 %v240, 0.0
        %v295 = vmax.f32 %v241, 0.0
        %v296 = vmax.f32 %v242, 0.0
        %v297 = vmax.f32 %v243, 0.0
        %v298 = vmax.f32 %v244, 0.0
        %v299 = vmax.f32 %v245, 0.0
        %v300 = vmax.f32 %v246, 0.0
        %v301 = vmax.f32 %v247, 0.0
        %v302 = vmax.f32 %v248, 0.0
        %v303 = vmax.f32 %v249, 0.0
        %v304 = vmax.f32 %v250, 0.0
        %v305 = vmax.f32 %v251, 0.0
        %v306 = vmin.f32 %v198, 0.0
        %v307 = vmin.f32 %v199, 0.0
        %v308 = vmin.f32 %v200, 0.0
        %v309 = vmin.f32 %v201, 0.0
        %v310 = vmin.f32 %v202, 0.0
        %v311 = vmin.f32 %v203, 0.0
        %v312 = vmin.f32 %v204, 0.0
        %v313 = vmin.f32 %v205, 0.0
        %v314 = vmin.f32 %v206, 0.0
        %v315 = vmin.f32 %v207, 0.0
        %v316 = vmin.f32 %v208, 0.0
        %v317 = vmin.f32 %v209, 0.0
        %v318 = vmin.f32 %v210, 0.0
        %v319 = vmin.f32 %v211, 0.0
        %v320 = vmin.f32 %v212, 0.0
        %v321 = vmin.f32 %v213, 0.0
        %v322 = vmin.f32 %v214, 0.0
        %v323 = vmin.f32 %v215, 0.0
        %v324 = vmin.f32 %v216, 0.0
        %v325 = vmin.f32 %v217, 0.0
        %v326 = vmin.f32 %v218, 0.0
        %v327 = vmin.f32 %v219, 0.0
        %v328 = vmin.f32 %v220, 0.0
        %v329 = vmin.f32 %v221, 0.0
        %v330 = vmin.f32 %v222, 0.0
        %v331 = vmin.f32 %v223, 0.0
        %v332 = vmin.f32 %v224, 0.0
        %v333 = vmin.f32 %v225, 0.0
        %v334 = vmin.f32 %v226, 0.0
        %v335 = vmin.f32 %v227, 0.0
        %v336 = vmin.f32 %v228, 0.0
        %v337 = vmin.f32 %v229, 0.0
        %v338 = vmin.f32 %v230, 0.0
        %v339 = vmin.f32 %v231, 0.0
        %v340 = vmin.f32 %v232, 0.0
        %v341 = vmin.f32 %v233, 0.0
        %v342 = vmin.f32 %v234, 0.0
        %v343 = vmin.f32 %v235, 0.0
        %v344 = vmin.f32 %v236, 0.0
        %v345 = vmin.f32 %v237, 0.0
        %v346 = vmin.f32 %v238, 0.0
        %v347 = vmin.f32 %v239, 0.0
        %v348 = vmin.f32 %v240, 0.0
        %v349 = vmin.f32 %v241, 0.0
        %v350 = vmin.f32 %v242, 0.0
        %v351 = vmin.f32 %v243, 0.0
        %v352 = vmin.f32 %v244, 0.0
        %v353 = vmin.f32 %v245, 0.0
        %v354 = vmin.f32 %v246, 0.0
        %v355 = vmin.f32 %v247, 0.0
        %v356 = vmin.f32 %v248, 0.0
        %v357 = vmin.f32 %v249, 0.0
        %v358 = vmin.f32 %v250, 0.0
        %v359 = vmin.f32 %v251, 0.0
        %414 = vrot.lane.b32.xlu0 %v306, 4
        %v415 = vpop.permute.xlu0 %414
        %416 = vrot.lane.b32.xlu0 %v307, 4
        %v417 = vpop.permute.xlu0 %416
        %418 = vrot.lane.b32.xlu0 %v308, 4
        %v419 = vpop.permute.xlu0 %418
        %420 = vrot.lane.b32.xlu0 %v309, 4
        %v421 = vpop.permute.xlu0 %420
        %422 = vrot.lane.b32.xlu0 %v310, 4
        %v423 = vpop.permute.xlu0 %422
        %424 = vrot.lane.b32.xlu0 %v311, 4
        %v425 = vpop.permute.xlu0 %424
        %426 = vrot.lane.b32.xlu0 %v312, 4
        %v427 = vpop.permute.xlu0 %426
        %428 = vrot.lane.b32.xlu0 %v313, 4
        %v429 = vpop.permute.xlu0 %428
        %430 = vrot.lane.b32.xlu0 %v314, 4
        %v431 = vpop.permute.xlu0 %430
        %432 = vrot.lane.b32.xlu0 %v315, 4
        %v433 = vpop.permute.xlu0 %432
        %434 = vrot.lane.b32.xlu0 %v316, 4
        %v435 = vpop.permute.xlu0 %434
        %436 = vrot.lane.b32.xlu0 %v317, 4
        %v437 = vpop.permute.xlu0 %436
        %438 = vrot.lane.b32.xlu0 %v318, 4
        %v439 = vpop.permute.xlu0 %438
        %440 = vrot.lane.b32.xlu0 %v319, 4
        %v441 = vpop.permute.xlu0 %440
        %442 = vrot.lane.b32.xlu0 %v320, 4
        %v443 = vpop.permute.xlu0 %442
        %444 = vrot.lane.b32.xlu0 %v321, 4
        %v445 = vpop.permute.xlu0 %444
        %446 = vrot.lane.b32.xlu0 %v322, 4
        %v447 = vpop.permute.xlu0 %446
        %448 = vrot.lane.b32.xlu0 %v323, 4
        %v449 = vpop.permute.xlu0 %448
        %450 = vrot.lane.b32.xlu0 %v324, 4
        %v451 = vpop.permute.xlu0 %450
        %452 = vrot.lane.b32.xlu0 %v325, 4
        %v453 = vpop.permute.xlu0 %452
        %454 = vrot.lane.b32.xlu0 %v326, 4
        %v455 = vpop.permute.xlu0 %454
        %456 = vrot.lane.b32.xlu0 %v327, 4
        %v457 = vpop.permute.xlu0 %456
        %458 = vrot.lane.b32.xlu0 %v328, 4
        %v459 = vpop.permute.xlu0 %458
        %460 = vrot.lane.b32.xlu0 %v329, 4
        %v461 = vpop.permute.xlu0 %460
        %462 = vrot.lane.b32.xlu0 %v330, 4
        %v463 = vpop.permute.xlu0 %462
        %464 = vrot.lane.b32.xlu0 %v331, 4
        %v465 = vpop.permute.xlu0 %464
        %466 = vrot.lane.b32.xlu0 %v332, 4
        %v467 = vpop.permute.xlu0 %466
        %468 = vrot.lane.b32.xlu0 %v333, 4
        %v469 = vpop.permute.xlu0 %468
        %470 = vrot.lane.b32.xlu0 %v334, 4
        %v471 = vpop.permute.xlu0 %470
        %472 = vrot.lane.b32.xlu0 %v335, 4
        %v473 = vpop.permute.xlu0 %472
        %474 = vrot.lane.b32.xlu0 %v336, 4
        %v475 = vpop.permute.xlu0 %474
        %476 = vrot.lane.b32.xlu0 %v337, 4
        %v477 = vpop.permute.xlu0 %476
        %478 = vrot.lane.b32.xlu0 %v338, 4
        %v479 = vpop.permute.xlu0 %478
        %480 = vrot.lane.b32.xlu0 %v339, 4
        %v481 = vpop.permute.xlu0 %480
        %482 = vrot.lane.b32.xlu0 %v340, 4
        %v483 = vpop.permute.xlu0 %482
        %484 = vrot.lane.b32.xlu0 %v341, 4
        %v485 = vpop.permute.xlu0 %484
        %486 = vrot.lane.b32.xlu0 %v342, 4
        %v487 = vpop.permute.xlu0 %486
        %488 = vrot.lane.b32.xlu0 %v343, 4
        %v489 = vpop.permute.xlu0 %488
        %490 = vrot.lane.b32.xlu0 %v344, 4
        %v491 = vpop.permute.xlu0 %490
        %492 = vrot.lane.b32.xlu0 %v345, 4
        %v493 = vpop.permute.xlu0 %492
        %494 = vrot.lane.b32.xlu0 %v346, 4
        %v495 = vpop.permute.xlu0 %494
        %496 = vrot.lane.b32.xlu0 %v347, 4
        %v497 = vpop.permute.xlu0 %496
        %498 = vrot.lane.b32.xlu0 %v348, 4
        %v499 = vpop.permute.xlu0 %498
        %500 = vrot.lane.b32.xlu0 %v349, 4
        %v501 = vpop.permute.xlu0 %500
        %502 = vrot.lane.b32.xlu0 %v350, 4
        %v503 = vpop.permute.xlu0 %502
        %504 = vrot.lane.b32.xlu0 %v351, 4
        %v505 = vpop.permute.xlu0 %504
        %506 = vrot.lane.b32.xlu0 %v352, 4
        %v507 = vpop.permute.xlu0 %506
        %508 = vrot.lane.b32.xlu0 %v353, 4
        %v509 = vpop.permute.xlu0 %508
        %510 = vrot.lane.b32.xlu0 %v354, 4
        %v511 = vpop.permute.xlu0 %510
        %512 = vrot.lane.b32.xlu0 %v355, 4
        %v513 = vpop.permute.xlu0 %512
        %514 = vrot.lane.b32.xlu0 %v356, 4
        %v515 = vpop.permute.xlu0 %514
        %516 = vrot.lane.b32.xlu0 %v357, 4
        %v517 = vpop.permute.xlu0 %516
        %518 = vrot.lane.b32.xlu0 %v358, 4
        %v519 = vpop.permute.xlu0 %518
        %520 = vrot.lane.b32.xlu0 %v359, 4
        %v521 = vpop.permute.xlu0 %520
        %vm576 = vcmask 31744
        %v577 = vsel %vm576, %v252, %v415
        %v578 = vsel %vm576, %v253, %v417
        %v579 = vsel %vm576, %v254, %v419
        %v580 = vsel %vm576, %v255, %v421
        %v581 = vsel %vm576, %v256, %v423
        %v582 = vsel %vm576, %v257, %v425
        %v583 = vsel %vm576, %v258, %v427
        %v584 = vsel %vm576, %v259, %v429
        %v585 = vsel %vm576, %v260, %v431
        %v586 = vsel %vm576, %v261, %v433
        %v587 = vsel %vm576, %v262, %v435
        %v588 = vsel %vm576, %v263, %v437
        %v589 = vsel %vm576, %v264, %v439
        %v590 = vsel %vm576, %v265, %v441
        %v591 = vsel %vm576, %v266, %v443
        %v592 = vsel %vm576, %v267, %v445
        %v593 = vsel %vm576, %v268, %v447
        %v594 = vsel %vm576, %v269, %v449
        %v595 = vsel %vm576, %v270, %v451
        %v596 = vsel %vm576, %v271, %v453
        %v597 = vsel %vm576, %v272, %v455
        %v598 = vsel %vm576, %v273, %v457
        %v599 = vsel %vm576, %v274, %v459
        %v600 = vsel %vm576, %v275, %v461
        %v601 = vsel %vm576, %v276, %v463
        %v602 = vsel %vm576, %v277, %v465
        %v603 = vsel %vm576, %v278, %v467
        %v604 = vsel %vm576, %v279, %v469
        %v605 = vsel %vm576, %v280, %v471
        %v606 = vsel %vm576, %v281, %v473
        %v607 = vsel %vm576, %v282, %v475
        %v608 = vsel %vm576, %v283, %v477
        %v609 = vsel %vm576, %v284, %v479
        %v610 = vsel %vm576, %v285, %v481
        %v611 = vsel %vm576, %v286, %v483
        %v612 = vsel %vm576, %v287, %v485
        %v613 = vsel %vm576, %v288, %v487
        %v614 = vsel %vm576, %v289, %v489
        %v615 = vsel %vm576, %v290, %v491
        %v616 = vsel %vm576, %v291, %v493
        %v617 = vsel %vm576, %v292, %v495
        %v618 = vsel %vm576, %v293, %v497
        %v619 = vsel %vm576, %v294, %v499
        %v620 = vsel %vm576, %v295, %v501
        %v621 = vsel %vm576, %v296, %v503
        %v622 = vsel %vm576, %v297, %v505
        %v623 = vsel %vm576, %v298, %v507
        %v624 = vsel %vm576, %v299, %v509
        %v625 = vsel %vm576, %v300, %v511
        %v626 = vsel %vm576, %v301, %v513
        %v627 = vsel %vm576, %v302, %v515
        %v628 = vsel %vm576, %v303, %v517
        %v629 = vsel %vm576, %v304, %v519
        %v630 = vsel %vm576, %v305, %v521
        %vm679 = vcmask 1046528
        %v680 = vrot.slane %v577, 1
        %v681 = vrot.slane %v578, 1
        %v682 = vsel %vm679, %v680, %v681
        %v683 = vrot.slane %v579, 1
        %v684 = vsel %vm679, %v681, %v683
        %v685 = vrot.slane %v580, 1
        %v686 = vrot.slane %v581, 1
        %v687 = vsel %vm679, %v685, %v686
        %v688 = vrot.slane %v582, 1
        %v689 = vsel %vm679, %v686, %v688
        %v690 = vrot.slane %v583, 1
        %v691 = vrot.slane %v584, 1
        %v692 = vsel %vm679, %v690, %v691
        %v693 = vrot.slane %v585, 1
        %v694 = vsel %vm679, %v691, %v693
        %v695 = vrot.slane %v586, 1
        %v696 = vrot.slane %v587, 1
        %v697 = vsel %vm679, %v695, %v696
        %v698 = vrot.slane %v588, 1
        %v699 = vsel %vm679, %v696, %v698
        %v700 = vrot.slane %v589, 1
        %v701 = vrot.slane %v590, 1
        %v702 = vsel %vm679, %v700, %v701
        %v703 = vrot.slane %v591, 1
        %v704 = vsel %vm679, %v701, %v703
        %v705 = vrot.slane %v592, 1
        %v706 = vrot.slane %v593, 1
        %v707 = vsel %vm679, %v705, %v706
        %v708 = vrot.slane %v594, 1
        %v709 = vsel %vm679, %v706, %v708
        %v710 = vrot.slane %v595, 1
        %v711 = vrot.slane %v596, 1
        %v712 = vsel %vm679, %v710, %v711
        %v713 = vrot.slane %v597, 1
        %v714 = vsel %vm679, %v711, %v713
        %v715 = vrot.slane %v598, 1
        %v716 = vrot.slane %v599, 1
        %v717 = vsel %vm679, %v715, %v716
        %v718 = vrot.slane %v600, 1
        %v719 = vsel %vm679, %v716, %v718
        %v720 = vrot.slane %v601, 1
        %v721 = vrot.slane %v602, 1
        %v722 = vsel %vm679, %v720, %v721
        %v723 = vrot.slane %v603, 1
        %v724 = vsel %vm679, %v721, %v723
        %v725 = vrot.slane %v604, 1
        %v726 = vrot.slane %v605, 1
        %v727 = vsel %vm679, %v725, %v726
        %v728 = vrot.slane %v606, 1
        %v729 = vsel %vm679, %v726, %v728
        %v730 = vrot.slane %v607, 1
        %v731 = vrot.slane %v608, 1
        %v732 = vsel %vm679, %v730, %v731
        %v733 = vrot.slane %v609, 1
        %v734 = vsel %vm679, %v731, %v733
        %v735 = vrot.slane %v610, 1
        %v736 = vrot.slane %v611, 1
        %v737 = vsel %vm679, %v735, %v736
        %v738 = vrot.slane %v612, 1
        %v739 = vsel %vm679, %v736, %v738
        %v740 = vrot.slane %v613, 1
        %v741 = vrot.slane %v614, 1
        %v742 = vsel %vm679, %v740, %v741
        %v743 = vrot.slane %v615, 1
        %v744 = vsel %vm679, %v741, %v743
        %v745 = vrot.slane %v616, 1
        %v746 = vrot.slane %v617, 1
        %v747 = vsel %vm679, %v745, %v746
        %v748 = vrot.slane %v618, 1
        %v749 = vsel %vm679, %v746, %v748
        %v750 = vrot.slane %v619, 1
        %v751 = vrot.slane %v620, 1
        %v752 = vsel %vm679, %v750, %v751
        %v753 = vrot.slane %v621, 1
        %v754 = vsel %vm679, %v751, %v753
        %v755 = vrot.slane %v622, 1
        %v756 = vrot.slane %v623, 1
        %v757 = vsel %vm679, %v755, %v756
        %v758 = vrot.slane %v624, 1
        %v759 = vsel %vm679, %v756, %v758
        %760 = vrot.lane.b32.xlu0 %v682, 8
        %v761 = vpop.permute.xlu0 %760
        %762 = vrot.lane.b32.xlu0 %v684, 8
        %v763 = vpop.permute.xlu0 %762
        %764 = vrot.lane.b32.xlu0 %v687, 8
        %v765 = vpop.permute.xlu0 %764
        %766 = vrot.lane.b32.xlu0 %v689, 8
        %v767 = vpop.permute.xlu0 %766
        %768 = vrot.lane.b32.xlu0 %v692, 8
        %v769 = vpop.permute.xlu0 %768
        %770 = vrot.lane.b32.xlu0 %v694, 8
        %v771 = vpop.permute.xlu0 %770
        %772 = vrot.lane.b32.xlu0 %v697, 8
        %v773 = vpop.permute.xlu0 %772
        %774 = vrot.lane.b32.xlu0 %v699, 8
        %v775 = vpop.permute.xlu0 %774
        %776 = vrot.lane.b32.xlu0 %v702, 8
        %v777 = vpop.permute.xlu0 %776
        %778 = vrot.lane.b32.xlu0 %v704, 8
        %v779 = vpop.permute.xlu0 %778
        %780 = vrot.lane.b32.xlu0 %v707, 8
        %v781 = vpop.permute.xlu0 %780
        %782 = vrot.lane.b32.xlu0 %v709, 8
        %v783 = vpop.permute.xlu0 %782
        %784 = vrot.lane.b32.xlu0 %v712, 8
        %v785 = vpop.permute.xlu0 %784
        %786 = vrot.lane.b32.xlu0 %v714, 8
        %v787 = vpop.permute.xlu0 %786
        %788 = vrot.lane.b32.xlu0 %v717, 8
        %v789 = vpop.permute.xlu0 %788
        %790 = vrot.lane.b32.xlu0 %v719, 8
        %v791 = vpop.permute.xlu0 %790
        %792 = vrot.lane.b32.xlu0 %v722, 8
        %v793 = vpop.permute.xlu0 %792
        %794 = vrot.lane.b32.xlu0 %v724, 8
        %v795 = vpop.permute.xlu0 %794
        %796 = vrot.lane.b32.xlu0 %v727, 8
        %v797 = vpop.permute.xlu0 %796
        %798 = vrot.lane.b32.xlu0 %v729, 8
        %v799 = vpop.permute.xlu0 %798
        %800 = vrot.lane.b32.xlu0 %v732, 8
        %v801 = vpop.permute.xlu0 %800
        %802 = vrot.lane.b32.xlu0 %v734, 8
        %v803 = vpop.permute.xlu0 %802
        %804 = vrot.lane.b32.xlu0 %v737, 8
        %v805 = vpop.permute.xlu0 %804
        %806 = vrot.lane.b32.xlu0 %v739, 8
        %v807 = vpop.permute.xlu0 %806
        %808 = vrot.lane.b32.xlu0 %v742, 8
        %v809 = vpop.permute.xlu0 %808
        %810 = vrot.lane.b32.xlu0 %v744, 8
        %v811 = vpop.permute.xlu0 %810
        %812 = vrot.lane.b32.xlu0 %v747, 8
        %v813 = vpop.permute.xlu0 %812
        %814 = vrot.lane.b32.xlu0 %v749, 8
        %v815 = vpop.permute.xlu0 %814
        %816 = vrot.lane.b32.xlu0 %v752, 8
        %v817 = vpop.permute.xlu0 %816
        %818 = vrot.lane.b32.xlu0 %v754, 8
        %v819 = vpop.permute.xlu0 %818
        %820 = vrot.lane.b32.xlu0 %v757, 8
        %v821 = vpop.permute.xlu0 %820
        %822 = vrot.lane.b32.xlu0 %v759, 8
        %v823 = vpop.permute.xlu0 %822
        %vm856 = vcmask 1045504
        %v857 = vrot.slane %v577, 2
        %v858 = vrot.slane %v578, 2
        %v859 = vsel %vm856, %v857, %v858
        %v860 = vrot.slane %v579, 2
        %v861 = vsel %vm856, %v858, %v860
        %v862 = vrot.slane %v580, 2
        %v863 = vrot.slane %v581, 2
        %v864 = vsel %vm856, %v862, %v863
        %v865 = vrot.slane %v582, 2
        %v866 = vsel %vm856, %v863, %v865
        %v867 = vrot.slane %v583, 2
        %v868 = vrot.slane %v584, 2
        %v869 = vsel %vm856, %v867, %v868
        %v870 = vrot.slane %v585, 2
        %v871 = vsel %vm856, %v868, %v870
        %v872 = vrot.slane %v586, 2
        %v873 = vrot.slane %v587, 2
        %v874 = vsel %vm856, %v872, %v873
        %v875 = vrot.slane %v588, 2
        %v876 = vsel %vm856, %v873, %v875
        %v877 = vrot.slane %v589, 2
        %v878 = vrot.slane %v590, 2
        %v879 = vsel %vm856, %v877, %v878
        %v880 = vrot.slane %v591, 2
        %v881 = vsel %vm856, %v878, %v880
        %v882 = vrot.slane %v592, 2
        %v883 = vrot.slane %v593, 2
        %v884 = vsel %vm856, %v882, %v883
        %v885 = vrot.slane %v594, 2
        %v886 = vsel %vm856, %v883, %v885
        %v887 = vrot.slane %v595, 2
        %v888 = vrot.slane %v596, 2
        %v889 = vsel %vm856, %v887, %v888
        %v890 = vrot.slane %v597, 2
        %v891 = vsel %vm856, %v888, %v890
        %v892 = vrot.slane %v598, 2
        %v893 = vrot.slane %v599, 2
        %v894 = vsel %vm856, %v892, %v893
        %v895 = vrot.slane %v600, 2
        %v896 = vsel %vm856, %v893, %v895
        %v897 = vrot.slane %v601, 2
        %v898 = vrot.slane %v602, 2
        %v899 = vsel %vm856, %v897, %v898
        %v900 = vrot.slane %v603, 2
        %v901 = vsel %vm856, %v898, %v900
        %v902 = vrot.slane %v604, 2
        %v903 = vrot.slane %v605, 2
        %v904 = vsel %vm856, %v902, %v903
        %v905 = vrot.slane %v606, 2
        %v906 = vsel %vm856, %v903, %v905
        %v907 = vrot.slane %v607, 2
        %v908 = vrot.slane %v608, 2
        %v909 = vsel %vm856, %v907, %v908
        %v910 = vrot.slane %v609, 2
        %v911 = vsel %vm856, %v908, %v910
        %v912 = vrot.slane %v610, 2
        %v913 = vrot.slane %v611, 2
        %v914 = vsel %vm856, %v912, %v913
        %v915 = vrot.slane %v612, 2
        %v916 = vsel %vm856, %v913, %v915
        %v917 = vrot.slane %v613, 2
        %v918 = vrot.slane %v614, 2
        %v919 = vsel %vm856, %v917, %v918
        %v920 = vrot.slane %v615, 2
        %v921 = vsel %vm856, %v918, %v920
        %v922 = vrot.slane %v616, 2
        %v923 = vrot.slane %v617, 2
        %v924 = vsel %vm856, %v922, %v923
        %v925 = vrot.slane %v618, 2
        %v926 = vsel %vm856, %v923, %v925
        %v927 = vrot.slane %v619, 2
        %v928 = vrot.slane %v620, 2
        %v929 = vsel %vm856, %v927, %v928
        %v930 = vrot.slane %v621, 2
        %v931 = vsel %vm856, %v928, %v930
        %v932 = vrot.slane %v622, 2
        %v933 = vrot.slane %v623, 2
        %v934 = vsel %vm856, %v932, %v933
        %v935 = vrot.slane %v624, 2
        %v936 = vsel %vm856, %v933, %v935
        %937 = vrot.lane.b32.xlu0 %v859, 16
        %v938 = vpop.permute.xlu0 %937
        %939 = vrot.lane.b32.xlu0 %v861, 16
        %v940 = vpop.permute.xlu0 %939
        %941 = vrot.lane.b32.xlu0 %v864, 16
        %v942 = vpop.permute.xlu0 %941
        %943 = vrot.lane.b32.xlu0 %v866, 16
        %v944 = vpop.permute.xlu0 %943
        %945 = vrot.lane.b32.xlu0 %v869, 16
        %v946 = vpop.permute.xlu0 %945
        %947 = vrot.lane.b32.xlu0 %v871, 16
        %v948 = vpop.permute.xlu0 %947
        %949 = vrot.lane.b32.xlu0 %v874, 16
        %v950 = vpop.permute.xlu0 %949
        %951 = vrot.lane.b32.xlu0 %v876, 16
        %v952 = vpop.permute.xlu0 %951
        %953 = vrot.lane.b32.xlu0 %v879, 16
        %v954 = vpop.permute.xlu0 %953
        %955 = vrot.lane.b32.xlu0 %v881, 16
        %v956 = vpop.permute.xlu0 %955
        %957 = vrot.lane.b32.xlu0 %v884, 16
        %v958 = vpop.permute.xlu0 %957
        %959 = vrot.lane.b32.xlu0 %v886, 16
        %v960 = vpop.permute.xlu0 %959
        %961 = vrot.lane.b32.xlu0 %v889, 16
        %v962 = vpop.permute.xlu0 %961
        %963 = vrot.lane.b32.xlu0 %v891, 16
        %v964 = vpop.permute.xlu0 %963
        %965 = vrot.lane.b32.xlu0 %v894, 16
        %v966 = vpop.permute.xlu0 %965
        %967 = vrot.lane.b32.xlu0 %v896, 16
        %v968 = vpop.permute.xlu0 %967
        %969 = vrot.lane.b32.xlu0 %v899, 16
        %v970 = vpop.permute.xlu0 %969
        %971 = vrot.lane.b32.xlu0 %v901, 16
        %v972 = vpop.permute.xlu0 %971
        %973 = vrot.lane.b32.xlu0 %v904, 16
        %v974 = vpop.permute.xlu0 %973
        %975 = vrot.lane.b32.xlu0 %v906, 16
        %v976 = vpop.permute.xlu0 %975
        %977 = vrot.lane.b32.xlu0 %v909, 16
        %v978 = vpop.permute.xlu0 %977
        %979 = vrot.lane.b32.xlu0 %v911, 16
        %v980 = vpop.permute.xlu0 %979
        %981 = vrot.lane.b32.xlu0 %v914, 16
        %v982 = vpop.permute.xlu0 %981
        %983 = vrot.lane.b32.xlu0 %v916, 16
        %v984 = vpop.permute.xlu0 %983
        %985 = vrot.lane.b32.xlu0 %v919, 16
        %v986 = vpop.permute.xlu0 %985
        %987 = vrot.lane.b32.xlu0 %v921, 16
        %v988 = vpop.permute.xlu0 %987
        %989 = vrot.lane.b32.xlu0 %v924, 16
        %v990 = vpop.permute.xlu0 %989
        %991 = vrot.lane.b32.xlu0 %v926, 16
        %v992 = vpop.permute.xlu0 %991
        %993 = vrot.lane.b32.xlu0 %v929, 16
        %v994 = vpop.permute.xlu0 %993
        %995 = vrot.lane.b32.xlu0 %v931, 16
        %v996 = vpop.permute.xlu0 %995
        %997 = vrot.lane.b32.xlu0 %v934, 16
        %v998 = vpop.permute.xlu0 %997
        %999 = vrot.lane.b32.xlu0 %v936, 16
        %v1000 = vpop.permute.xlu0 %999
        %1035 = vrot.lane.b32.xlu0 %v580, 24
        %v1036 = vpop.permute.xlu0 %1035
        %1037 = vrot.lane.b32.xlu0 %v581, 24
        %v1038 = vpop.permute.xlu0 %1037
        %1039 = vrot.lane.b32.xlu0 %v583, 24
        %v1040 = vpop.permute.xlu0 %1039
        %1041 = vrot.lane.b32.xlu0 %v584, 24
        %v1042 = vpop.permute.xlu0 %1041
        %1043 = vrot.lane.b32.xlu0 %v586, 24
        %v1044 = vpop.permute.xlu0 %1043
        %1045 = vrot.lane.b32.xlu0 %v587, 24
        %v1046 = vpop.permute.xlu0 %1045
        %1047 = vrot.lane.b32.xlu0 %v589, 24
        %v1048 = vpop.permute.xlu0 %1047
        %1049 = vrot.lane.b32.xlu0 %v590, 24
        %v1050 = vpop.permute.xlu0 %1049
        %1051 = vrot.lane.b32.xlu0 %v592, 24
        %v1052 = vpop.permute.xlu0 %1051
        %1053 = vrot.lane.b32.xlu0 %v593, 24
        %v1054 = vpop.permute.xlu0 %1053
        %1055 = vrot.lane.b32.xlu0 %v595, 24
        %v1056 = vpop.permute.xlu0 %1055
        %1057 = vrot.lane.b32.xlu0 %v596, 24
        %v1058 = vpop.permute.xlu0 %1057
        %1059 = vrot.lane.b32.xlu0 %v598, 24
        %v1060 = vpop.permute.xlu0 %1059
        %1061 = vrot.lane.b32.xlu0 %v599, 24
        %v1062 = vpop.permute.xlu0 %1061
        %1063 = vrot.lane.b32.xlu0 %v601, 24
        %v1064 = vpop.permute.xlu0 %1063
        %1065 = vrot.lane.b32.xlu0 %v602, 24
        %v1066 = vpop.permute.xlu0 %1065
        %1067 = vrot.lane.b32.xlu0 %v604, 24
        %v1068 = vpop.permute.xlu0 %1067
        %1069 = vrot.lane.b32.xlu0 %v605, 24
        %v1070 = vpop.permute.xlu0 %1069
        %1071 = vrot.lane.b32.xlu0 %v607, 24
        %v1072 = vpop.permute.xlu0 %1071
        %1073 = vrot.lane.b32.xlu0 %v608, 24
        %v1074 = vpop.permute.xlu0 %1073
        %1075 = vrot.lane.b32.xlu0 %v610, 24
        %v1076 = vpop.permute.xlu0 %1075
        %1077 = vrot.lane.b32.xlu0 %v611, 24
        %v1078 = vpop.permute.xlu0 %1077
        %1079 = vrot.lane.b32.xlu0 %v613, 24
        %v1080 = vpop.permute.xlu0 %1079
        %1081 = vrot.lane.b32.xlu0 %v614, 24
        %v1082 = vpop.permute.xlu0 %1081
        %1083 = vrot.lane.b32.xlu0 %v616, 24
        %v1084 = vpop.permute.xlu0 %1083
        %1085 = vrot.lane.b32.xlu0 %v617, 24
        %v1086 = vpop.permute.xlu0 %1085
        %1087 = vrot.lane.b32.xlu0 %v619, 24
        %v1088 = vpop.permute.xlu0 %1087
        %1089 = vrot.lane.b32.xlu0 %v620, 24
        %v1090 = vpop.permute.xlu0 %1089
        %1091 = vrot.lane.b32.xlu0 %v622, 24
        %v1092 = vpop.permute.xlu0 %1091
        %1093 = vrot.lane.b32.xlu0 %v623, 24
        %v1094 = vpop.permute.xlu0 %1093
        %1095 = vrot.lane.b32.xlu0 %v625, 24
        %v1096 = vpop.permute.xlu0 %1095
        %1097 = vrot.lane.b32.xlu0 %v626, 24
        %v1098 = vpop.permute.xlu0 %1097
        %v1132 = vrot.slane %v625, 1
        %v1133 = vrot.slane %v626, 1
        %v1134 = vsel %vm679, %v1132, %v1133
        %v1135 = vrot.slane %v627, 1
        %v1136 = vsel %vm679, %v1133, %v1135
        %1137 = vrot.lane.b32.xlu0 %v687, 32
        %v1138 = vpop.permute.xlu0 %1137
        %1139 = vrot.lane.b32.xlu0 %v689, 32
        %v1140 = vpop.permute.xlu0 %1139
        %1141 = vrot.lane.b32.xlu0 %v692, 32
        %v1142 = vpop.permute.xlu0 %1141
        %1143 = vrot.lane.b32.xlu0 %v694, 32
        %v1144 = vpop.permute.xlu0 %1143
        %1145 = vrot.lane.b32.xlu0 %v697, 32
        %v1146 = vpop.permute.xlu0 %1145
        %1147 = vrot.lane.b32.xlu0 %v699, 32
        %v1148 = vpop.permute.xlu0 %1147
        %1149 = vrot.lane.b32.xlu0 %v702, 32
        %v1150 = vpop.permute.xlu0 %1149
        %1151 = vrot.lane.b32.xlu0 %v704, 32
        %v1152 = vpop.permute.xlu0 %1151
        %1153 = vrot.lane.b32.xlu0 %v707, 32
        %v1154 = vpop.permute.xlu0 %1153
        %1155 = vrot.lane.b32.xlu0 %v709, 32
        %v1156 = vpop.permute.xlu0 %1155
        %1157 = vrot.lane.b32.xlu0 %v712, 32
        %v1158 = vpop.permute.xlu0 %1157
        %1159 = vrot.lane.b32.xlu0 %v714, 32
        %v1160 = vpop.permute.xlu0 %1159
        %1161 = vrot.lane.b32.xlu0 %v717, 32
        %v1162 = vpop.permute.xlu0 %1161
        %1163 = vrot.lane.b32.xlu0 %v719, 32
        %v1164 = vpop.permute.xlu0 %1163
        %1165 = vrot.lane.b32.xlu0 %v722, 32
        %v1166 = vpop.permute.xlu0 %1165
        %1167 = vrot.lane.b32.xlu0 %v724, 32
        %v1168 = vpop.permute.xlu0 %1167
        %1169 = vrot.lane.b32.xlu0 %v727, 32
        %v1170 = vpop.permute.xlu0 %1169
        %1171 = vrot.lane.b32.xlu0 %v729, 32
        %v1172 = vpop.permute.xlu0 %1171
        %1173 = vrot.lane.b32.xlu0 %v732, 32
        %v1174 = vpop.permute.xlu0 %1173
        %1175 = vrot.lane.b32.xlu0 %v734, 32
        %v1176 = vpop.permute.xlu0 %1175
        %1177 = vrot.lane.b32.xlu0 %v737, 32
        %v1178 = vpop.permute.xlu0 %1177
        %1179 = vrot.lane.b32.xlu0 %v739, 32
        %v1180 = vpop.permute.xlu0 %1179
        %1181 = vrot.lane.b32.xlu0 %v742, 32
        %v1182 = vpop.permute.xlu0 %1181
        %1183 = vrot.lane.b32.xlu0 %v744, 32
        %v1184 = vpop.permute.xlu0 %1183
        %1185 = vrot.lane.b32.xlu0 %v747, 32
        %v1186 = vpop.permute.xlu0 %1185
        %1187 = vrot.lane.b32.xlu0 %v749, 32
        %v1188 = vpop.permute.xlu0 %1187
        %1189 = vrot.lane.b32.xlu0 %v752, 32
        %v1190 = vpop.permute.xlu0 %1189
        %1191 = vrot.lane.b32.xlu0 %v754, 32
        %v1192 = vpop.permute.xlu0 %1191
        %1193 = vrot.lane.b32.xlu0 %v757, 32
        %v1194 = vpop.permute.xlu0 %1193
        %1195 = vrot.lane.b32.xlu0 %v759, 32
        %v1196 = vpop.permute.xlu0 %1195
        %1197 = vrot.lane.b32.xlu0 %v1134, 32
        %v1198 = vpop.permute.xlu0 %1197
        %1199 = vrot.lane.b32.xlu0 %v1136, 32
        %v1200 = vpop.permute.xlu0 %1199
        %v1233 = vrot.slane %v625, 2
        %v1234 = vrot.slane %v626, 2
        %v1235 = vsel %vm856, %v1233, %v1234
        %v1236 = vrot.slane %v627, 2
        %v1237 = vsel %vm856, %v1234, %v1236
        %1238 = vrot.lane.b32.xlu0 %v864, 40
        %v1239 = vpop.permute.xlu0 %1238
        %1240 = vrot.lane.b32.xlu0 %v866, 40
        %v1241 = vpop.permute.xlu0 %1240
        %1242 = vrot.lane.b32.xlu0 %v869, 40
        %v1243 = vpop.permute.xlu0 %1242
        %1244 = vrot.lane.b32.xlu0 %v871, 40
        %v1245 = vpop.permute.xlu0 %1244
        %1246 = vrot.lane.b32.xlu0 %v874, 40
        %v1247 = vpop.permute.xlu0 %1246
        %1248 = vrot.lane.b32.xlu0 %v876, 40
        %v1249 = vpop.permute.xlu0 %1248
        %1250 = vrot.lane.b32.xlu0 %v879, 40
        %v1251 = vpop.permute.xlu0 %1250
        %1252 = vrot.lane.b32.xlu0 %v881, 40
        %v1253 = vpop.permute.xlu0 %1252
        %1254 = vrot.lane.b32.xlu0 %v884, 40
        %v1255 = vpop.permute.xlu0 %1254
        %1256 = vrot.lane.b32.xlu0 %v886, 40
        %v1257 = vpop.permute.xlu0 %1256
        %1258 = vrot.lane.b32.xlu0 %v889, 40
        %v1259 = vpop.permute.xlu0 %1258
        %1260 = vrot.lane.b32.xlu0 %v891, 40
        %v1261 = vpop.permute.xlu0 %1260
        %1262 = vrot.lane.b32.xlu0 %v894, 40
        %v1263 = vpop.permute.xlu0 %1262
        %1264 = vrot.lane.b32.xlu0 %v896, 40
        %v1265 = vpop.permute.xlu0 %1264
        %1266 = vrot.lane.b32.xlu0 %v899, 40
        %v1267 = vpop.permute.xlu0 %1266
        %1268 = vrot.lane.b32.xlu0 %v901, 40
        %v1269 = vpop.permute.xlu0 %1268
        %1270 = vrot.lane.b32.xlu0 %v904, 40
        %v1271 = vpop.permute.xlu0 %1270
        %1272 = vrot.lane.b32.xlu0 %v906, 40
        %v1273 = vpop.permute.xlu0 %1272
        %1274 = vrot.lane.b32.xlu0 %v909, 40
        %v1275 = vpop.permute.xlu0 %1274
        %1276 = vrot.lane.b32.xlu0 %v911, 40
        %v1277 = vpop.permute.xlu0 %1276
        %1278 = vrot.lane.b32.xlu0 %v914, 40
        %v1279 = vpop.permute.xlu0 %1278
        %1280 = vrot.lane.b32.xlu0 %v916, 40
        %v1281 = vpop.permute.xlu0 %1280
        %1282 = vrot.lane.b32.xlu0 %v919, 40
        %v1283 = vpop.permute.xlu0 %1282
        %1284 = vrot.lane.b32.xlu0 %v921, 40
        %v1285 = vpop.permute.xlu0 %1284
        %1286 = vrot.lane.b32.xlu0 %v924, 40
        %v1287 = vpop.permute.xlu0 %1286
        %1288 = vrot.lane.b32.xlu0 %v926, 40
        %v1289 = vpop.permute.xlu0 %1288
        %1290 = vrot.lane.b32.xlu0 %v929, 40
        %v1291 = vpop.permute.xlu0 %1290
        %1292 = vrot.lane.b32.xlu0 %v931, 40
        %v1293 = vpop.permute.xlu0 %1292
        %1294 = vrot.lane.b32.xlu0 %v934, 40
        %v1295 = vpop.permute.xlu0 %1294
        %1296 = vrot.lane.b32.xlu0 %v936, 40
        %v1297 = vpop.permute.xlu0 %1296
        %1298 = vrot.lane.b32.xlu0 %v1235, 40
        %v1299 = vpop.permute.xlu0 %1298
        %1300 = vrot.lane.b32.xlu0 %v1237, 40
        %v1301 = vpop.permute.xlu0 %1300
        %1336 = vrot.lane.b32.xlu0 %v583, 48
        %v1337 = vpop.permute.xlu0 %1336
        %1338 = vrot.lane.b32.xlu0 %v584, 48
        %v1339 = vpop.permute.xlu0 %1338
        %1340 = vrot.lane.b32.xlu0 %v586, 48
        %v1341 = vpop.permute.xlu0 %1340
        %1342 = vrot.lane.b32.xlu0 %v587, 48
        %v1343 = vpop.permute.xlu0 %1342
        %1344 = vrot.lane.b32.xlu0 %v589, 48
        %v1345 = vpop.permute.xlu0 %1344
        %1346 = vrot.lane.b32.xlu0 %v590, 48
        %v1347 = vpop.permute.xlu0 %1346
        %1348 = vrot.lane.b32.xlu0 %v592, 48
        %v1349 = vpop.permute.xlu0 %1348
        %1350 = vrot.lane.b32.xlu0 %v593, 48
        %v1351 = vpop.permute.xlu0 %1350
        %1352 = vrot.lane.b32.xlu0 %v595, 48
        %v1353 = vpop.permute.xlu0 %1352
        %1354 = vrot.lane.b32.xlu0 %v596, 48
        %v1355 = vpop.permute.xlu0 %1354
        %1356 = vrot.lane.b32.xlu0 %v598, 48
        %v1357 = vpop.permute.xlu0 %1356
        %1358 = vrot.lane.b32.xlu0 %v599, 48
        %v1359 = vpop.permute.xlu0 %1358
        %1360 = vrot.lane.b32.xlu0 %v601, 48
        %v1361 = vpop.permute.xlu0 %1360
        %1362 = vrot.lane.b32.xlu0 %v602, 48
        %v1363 = vpop.permute.xlu0 %1362
        %1364 = vrot.lane.b32.xlu0 %v604, 48
        %v1365 = vpop.permute.xlu0 %1364
        %1366 = vrot.lane.b32.xlu0 %v605, 48
        %v1367 = vpop.permute.xlu0 %1366
        %1368 = vrot.lane.b32.xlu0 %v607, 48
        %v1369 = vpop.permute.xlu0 %1368
        %1370 = vrot.lane.b32.xlu0 %v608, 48
        %v1371 = vpop.permute.xlu0 %1370
        %1372 = vrot.lane.b32.xlu0 %v610, 48
        %v1373 = vpop.permute.xlu0 %1372
        %1374 = vrot.lane.b32.xlu0 %v611, 48
        %v1375 = vpop.permute.xlu0 %1374
        %1376 = vrot.lane.b32.xlu0 %v613, 48
        %v1377 = vpop.permute.xlu0 %1376
        %1378 = vrot.lane.b32.xlu0 %v614, 48
        %v1379 = vpop.permute.xlu0 %1378
        %1380 = vrot.lane.b32.xlu0 %v616, 48
        %v1381 = vpop.permute.xlu0 %1380
        %1382 = vrot.lane.b32.xlu0 %v617, 48
        %v1383 = vpop.permute.xlu0 %1382
        %1384 = vrot.lane.b32.xlu0 %v619, 48
        %v1385 = vpop.permute.xlu0 %1384
        %1386 = vrot.lane.b32.xlu0 %v620, 48
        %v1387 = vpop.permute.xlu0 %1386
        %1388 = vrot.lane.b32.xlu0 %v622, 48
        %v1389 = vpop.permute.xlu0 %1388
        %1390 = vrot.lane.b32.xlu0 %v623, 48
        %v1391 = vpop.permute.xlu0 %1390
        %1392 = vrot.lane.b32.xlu0 %v625, 48
        %v1393 = vpop.permute.xlu0 %1392
        %1394 = vrot.lane.b32.xlu0 %v626, 48
        %v1395 = vpop.permute.xlu0 %1394
        %1396 = vrot.lane.b32.xlu0 %v628, 48
        %v1397 = vpop.permute.xlu0 %1396
        %1398 = vrot.lane.b32.xlu0 %v629, 48
        %v1399 = vpop.permute.xlu0 %1398
        %v1433 = vrot.slane %v628, 1
        %v1434 = vrot.slane %v629, 1
        %v1435 = vsel %vm679, %v1433, %v1434
        %v1436 = vrot.slane %v630, 1
        %v1437 = vsel %vm679, %v1434, %v1436
        %1438 = vrot.lane.b32.xlu0 %v692, 56
        %v1439 = vpop.permute.xlu0 %1438
        %1440 = vrot.lane.b32.xlu0 %v694, 56
        %v1441 = vpop.permute.xlu0 %1440
        %1442 = vrot.lane.b32.xlu0 %v697, 56
        %v1443 = vpop.permute.xlu0 %1442
        %1444 = vrot.lane.b32.xlu0 %v699, 56
        %v1445 = vpop.permute.xlu0 %1444
        %1446 = vrot.lane.b32.xlu0 %v702, 56
        %v1447 = vpop.permute.xlu0 %1446
        %1448 = vrot.lane.b32.xlu0 %v704, 56
        %v1449 = vpop.permute.xlu0 %1448
        %1450 = vrot.lane.b32.xlu0 %v707, 56
        %v1451 = vpop.permute.xlu0 %1450
        %1452 = vrot.lane.b32.xlu0 %v709, 56
        %v1453 = vpop.permute.xlu0 %1452
        %1454 = vrot.lane.b32.xlu0 %v712, 56
        %v1455 = vpop.permute.xlu0 %1454
        %1456 = vrot.lane.b32.xlu0 %v714, 56
        %v1457 = vpop.permute.xlu0 %1456
        %1458 = vrot.lane.b32.xlu0 %v717, 56
        %v1459 = vpop.permute.xlu0 %1458
        %1460 = vrot.lane.b32.xlu0 %v719, 56
        %v1461 = vpop.permute.xlu0 %1460
        %1462 = vrot.lane.b32.xlu0 %v722, 56
        %v1463 = vpop.permute.xlu0 %1462
        %1464 = vrot.lane.b32.xlu0 %v724, 56
        %v1465 = vpop.permute.xlu0 %1464
        %1466 = vrot.lane.b32.xlu0 %v727, 56
        %v1467 = vpop.permute.xlu0 %1466
        %1468 = vrot.lane.b32.xlu0 %v729, 56
        %v1469 = vpop.permute.xlu0 %1468
        %1470 = vrot.lane.b32.xlu0 %v732, 56
        %v1471 = vpop.permute.xlu0 %1470
        %1472 = vrot.lane.b32.xlu0 %v734, 56
        %v1473 = vpop.permute.xlu0 %1472
        %1474 = vrot.lane.b32.xlu0 %v737, 56
        %v1475 = vpop.permute.xlu0 %1474
        %1476 = vrot.lane.b32.xlu0 %v739, 56
        %v1477 = vpop.permute.xlu0 %1476
        %1478 = vrot.lane.b32.xlu0 %v742, 56
        %v1479 = vpop.permute.xlu0 %1478
        %1480 = vrot.lane.b32.xlu0 %v744, 56
        %v1481 = vpop.permute.xlu0 %1480
        %1482 = vrot.lane.b32.xlu0 %v747, 56
        %v1483 = vpop.permute.xlu0 %1482
        %1484 = vrot.lane.b32.xlu0 %v749, 56
        %v1485 = vpop.permute.xlu0 %1484
        %1486 = vrot.lane.b32.xlu0 %v752, 56
        %v1487 = vpop.permute.xlu0 %1486
        %1488 = vrot.lane.b32.xlu0 %v754, 56
        %v1489 = vpop.permute.xlu0 %1488
        %1490 = vrot.lane.b32.xlu0 %v757, 56
        %v1491 = vpop.permute.xlu0 %1490
        %1492 = vrot.lane.b32.xlu0 %v759, 56
        %v1493 = vpop.permute.xlu0 %1492
        %1494 = vrot.lane.b32.xlu0 %v1134, 56
        %v1495 = vpop.permute.xlu0 %1494
        %1496 = vrot.lane.b32.xlu0 %v1136, 56
        %v1497 = vpop.permute.xlu0 %1496
        %1498 = vrot.lane.b32.xlu0 %v1435, 56
        %v1499 = vpop.permute.xlu0 %1498
        %1500 = vrot.lane.b32.xlu0 %v1437, 56
        %v1501 = vpop.permute.xlu0 %1500
        %v1534 = vrot.slane %v628, 2
        %v1535 = vrot.slane %v629, 2
        %v1536 = vsel %vm856, %v1534, %v1535
        %v1537 = vrot.slane %v630, 2
        %v1538 = vsel %vm856, %v1535, %v1537
        %1539 = vrot.lane.b32.xlu0 %v869, 64
        %v1540 = vpop.permute.xlu0 %1539
        %1541 = vrot.lane.b32.xlu0 %v871, 64
        %v1542 = vpop.permute.xlu0 %1541
        %1543 = vrot.lane.b32.xlu0 %v874, 64
        %v1544 = vpop.permute.xlu0 %1543
        %1545 = vrot.lane.b32.xlu0 %v876, 64
        %v1546 = vpop.permute.xlu0 %1545
        %1547 = vrot.lane.b32.xlu0 %v879, 64
        %v1548 = vpop.permute.xlu0 %1547
        %1549 = vrot.lane.b32.xlu0 %v881, 64
        %v1550 = vpop.permute.xlu0 %1549
        %1551 = vrot.lane.b32.xlu0 %v884, 64
        %v1552 = vpop.permute.xlu0 %1551
        %1553 = vrot.lane.b32.xlu0 %v886, 64
        %v1554 = vpop.permute.xlu0 %1553
        %1555 = vrot.lane.b32.xlu0 %v889, 64
        %v1556 = vpop.permute.xlu0 %1555
        %1557 = vrot.lane.b32.xlu0 %v891, 64
        %v1558 = vpop.permute.xlu0 %1557
        %1559 = vrot.lane.b32.xlu0 %v894, 64
        %v1560 = vpop.permute.xlu0 %1559
        %1561 = vrot.lane.b32.xlu0 %v896, 64
        %v1562 = vpop.permute.xlu0 %1561
        %1563 = vrot.lane.b32.xlu0 %v899, 64
        %v1564 = vpop.permute.xlu0 %1563
        %1565 = vrot.lane.b32.xlu0 %v901, 64
        %v1566 = vpop.permute.xlu0 %1565
        %1567 = vrot.lane.b32.xlu0 %v904, 64
        %v1568 = vpop.permute.xlu0 %1567
        %1569 = vrot.lane.b32.xlu0 %v906, 64
        %v1570 = vpop.permute.xlu0 %1569
        %1571 = vrot.lane.b32.xlu0 %v909, 64
        %v1572 = vpop.permute.xlu0 %1571
        %1573 = vrot.lane.b32.xlu0 %v911, 64
        %v1574 = vpop.permute.xlu0 %1573
        %1575 = vrot.lane.b32.xlu0 %v914, 64
        %v1576 = vpop.permute.xlu0 %1575
        %1577 = vrot.lane.b32.xlu0 %v916, 64
        %v1578 = vpop.permute.xlu0 %1577
        %1579 = vrot.lane.b32.xlu0 %v919, 64
        %v1580 = vpop.permute.xlu0 %1579
        %1581 = vrot.lane.b32.xlu0 %v921, 64
        %v1582 = vpop.permute.xlu0 %1581
        %1583 = vrot.lane.b32.xlu0 %v924, 64
        %v1584 = vpop.permute.xlu0 %1583
        %1585 = vrot.lane.b32.xlu0 %v926, 64
        %v1586 = vpop.permute.xlu0 %1585
        %1587 = vrot.lane.b32.xlu0 %v929, 64
        %v1588 = vpop.permute.xlu0 %1587
        %1589 = vrot.lane.b32.xlu0 %v931, 64
        %v1590 = vpop.permute.xlu0 %1589
        %1591 = vrot.lane.b32.xlu0 %v934, 64
        %v1592 = vpop.permute.xlu0 %1591
        %1593 = vrot.lane.b32.xlu0 %v936, 64
        %v1594 = vpop.permute.xlu0 %1593
        %1595 = vrot.lane.b32.xlu0 %v1235, 64
        %v1596 = vpop.permute.xlu0 %1595
        %1597 = vrot.lane.b32.xlu0 %v1237, 64
        %v1598 = vpop.permute.xlu0 %1597
        %1599 = vrot.lane.b32.xlu0 %v1536, 64
        %v1600 = vpop.permute.xlu0 %1599
        %1601 = vrot.lane.b32.xlu0 %v1538, 64
        %v1602 = vpop.permute.xlu0 %1601
        %vm1635 = vcmask 64512
        %v1636 = vsel %vm1635, %v577, %v761
        %v1637 = vsel %vm1635, %v578, %v763
        %v1638 = vsel %vm1635, %v580, %v765
        %v1639 = vsel %vm1635, %v581, %v767
        %v1640 = vsel %vm1635, %v583, %v769
        %v1641 = vsel %vm1635, %v584, %v771
        %v1642 = vsel %vm1635, %v586, %v773
        %v1643 = vsel %vm1635, %v587, %v775
        %v1644 = vsel %vm1635, %v589, %v777
        %v1645 = vsel %vm1635, %v590, %v779
        %v1646 = vsel %vm1635, %v592, %v781
        %v1647 = vsel %vm1635, %v593, %v783
        %v1648 = vsel %vm1635, %v595, %v785
        %v1649 = vsel %vm1635, %v596, %v787
        %v1650 = vsel %vm1635, %v598, %v789
        %v1651 = vsel %vm1635, %v599, %v791
        %v1652 = vsel %vm1635, %v601, %v793
        %v1653 = vsel %vm1635, %v602, %v795
        %v1654 = vsel %vm1635, %v604, %v797
        %v1655 = vsel %vm1635, %v605, %v799
        %v1656 = vsel %vm1635, %v607, %v801
        %v1657 = vsel %vm1635, %v608, %v803
        %v1658 = vsel %vm1635, %v610, %v805
        %v1659 = vsel %vm1635, %v611, %v807
        %v1660 = vsel %vm1635, %v613, %v809
        %v1661 = vsel %vm1635, %v614, %v811
        %v1662 = vsel %vm1635, %v616, %v813
        %v1663 = vsel %vm1635, %v617, %v815
        %v1664 = vsel %vm1635, %v619, %v817
        %v1665 = vsel %vm1635, %v620, %v819
        %v1666 = vsel %vm1635, %v622, %v821
        %v1667 = vsel %vm1635, %v623, %v823
        %vm1668 = vcmask 130048
        %v1669 = vsel %vm1668, %v1636, %v938
        %v1670 = vsel %vm1668, %v1637, %v940
        %v1671 = vsel %vm1668, %v1638, %v942
        %v1672 = vsel %vm1668, %v1639, %v944
        %v1673 = vsel %vm1668, %v1640, %v946
        %v1674 = vsel %vm1668, %v1641, %v948
        %v1675 = vsel %vm1668, %v1642, %v950
        %v1676 = vsel %vm1668, %v1643, %v952
        %v1677 = vsel %vm1668, %v1644, %v954
        %v1678 = vsel %vm1668, %v1645, %v956
        %v1679 = vsel %vm1668, %v1646, %v958
        %v1680 = vsel %vm1668, %v1647, %v960
        %v1681 = vsel %vm1668, %v1648, %v962
        %v1682 = vsel %vm1668, %v1649, %v964
        %v1683 = vsel %vm1668, %v1650, %v966
        %v1684 = vsel %vm1668, %v1651, %v968
        %v1685 = vsel %vm1668, %v1652, %v970
        %v1686 = vsel %vm1668, %v1653, %v972
        %v1687 = vsel %vm1668, %v1654, %v974
        %v1688 = vsel %vm1668, %v1655, %v976
        %v1689 = vsel %vm1668, %v1656, %v978
        %v1690 = vsel %vm1668, %v1657, %v980
        %v1691 = vsel %vm1668, %v1658, %v982
        %v1692 = vsel %vm1668, %v1659, %v984
        %v1693 = vsel %vm1668, %v1660, %v986
        %v1694 = vsel %vm1668, %v1661, %v988
        %v1695 = vsel %vm1668, %v1662, %v990
        %v1696 = vsel %vm1668, %v1663, %v992
        %v1697 = vsel %vm1668, %v1664, %v994
        %v1698 = vsel %vm1668, %v1665, %v996
        %v1699 = vsel %vm1668, %v1666, %v998
        %v1700 = vsel %vm1668, %v1667, %v1000
        %vm1701 = vcmask 195584
        %v1702 = vsel %vm1701, %v1669, %v1036
        %v1703 = vsel %vm1701, %v1670, %v1038
        %v1704 = vsel %vm1701, %v1671, %v1040
        %v1705 = vsel %vm1701, %v1672, %v1042
        %v1706 = vsel %vm1701, %v1673, %v1044
        %v1707 = vsel %vm1701, %v1674, %v1046
        %v1708 = vsel %vm1701, %v1675, %v1048
        %v1709 = vsel %vm1701, %v1676, %v1050
        %v1710 = vsel %vm1701, %v1677, %v1052
        %v1711 = vsel %vm1701, %v1678, %v1054
        %v1712 = vsel %vm1701, %v1679, %v1056
        %v1713 = vsel %vm1701, %v1680, %v1058
        %v1714 = vsel %vm1701, %v1681, %v1060
        %v1715 = vsel %vm1701, %v1682, %v1062
        %v1716 = vsel %vm1701, %v1683, %v1064
        %v1717 = vsel %vm1701, %v1684, %v1066
        %v1718 = vsel %vm1701, %v1685, %v1068
        %v1719 = vsel %vm1701, %v1686, %v1070
        %v1720 = vsel %vm1701, %v1687, %v1072
        %v1721 = vsel %vm1701, %v1688, %v1074
        %v1722 = vsel %vm1701, %v1689, %v1076
        %v1723 = vsel %vm1701, %v1690, %v1078
        %v1724 = vsel %vm1701, %v1691, %v1080
        %v1725 = vsel %vm1701, %v1692, %v1082
        %v1726 = vsel %vm1701, %v1693, %v1084
        %v1727 = vsel %vm1701, %v1694, %v1086
        %v1728 = vsel %vm1701, %v1695, %v1088
        %v1729 = vsel %vm1701, %v1696, %v1090
        %v1730 = vsel %vm1701, %v1697, %v1092
        %v1731 = vsel %vm1701, %v1698, %v1094
        %v1732 = vsel %vm1701, %v1699, %v1096
        %v1733 = vsel %vm1701, %v1700, %v1098
        %vm1734 = vcmask 261120
        %v1735 = vsel %vm1734, %v1702, %v1138
        %v1736 = vsel %vm1734, %v1703, %v1140
        %v1737 = vsel %vm1734, %v1704, %v1142
        %v1738 = vsel %vm1734, %v1705, %v1144
        %v1739 = vsel %vm1734, %v1706, %v1146
        %v1740 = vsel %vm1734, %v1707, %v1148
        %v1741 = vsel %vm1734, %v1708, %v1150
        %v1742 = vsel %vm1734, %v1709, %v1152
        %v1743 = vsel %vm1734, %v1710, %v1154
        %v1744 = vsel %vm1734, %v1711, %v1156
        %v1745 = vsel %vm1734, %v1712, %v1158
        %v1746 = vsel %vm1734, %v1713, %v1160
        %v1747 = vsel %vm1734, %v1714, %v1162
        %v1748 = vsel %vm1734, %v1715, %v1164
        %v1749 = vsel %vm1734, %v1716, %v1166
        %v1750 = vsel %vm1734, %v1717, %v1168
        %v1751 = vsel %vm1734, %v1718, %v1170
        %v1752 = vsel %vm1734, %v1719, %v1172
        %v1753 = vsel %vm1734, %v1720, %v1174
        %v1754 = vsel %vm1734, %v1721, %v1176
        %v1755 = vsel %vm1734, %v1722, %v1178
        %v1756 = vsel %vm1734, %v1723, %v1180
        %v1757 = vsel %vm1734, %v1724, %v1182
        %v1758 = vsel %vm1734, %v1725, %v1184
        %v1759 = vsel %vm1734, %v1726, %v1186
        %v1760 = vsel %vm1734, %v1727, %v1188
        %v1761 = vsel %vm1734, %v1728, %v1190
        %v1762 = vsel %vm1734, %v1729, %v1192
        %v1763 = vsel %vm1734, %v1730, %v1194
        %v1764 = vsel %vm1734, %v1731, %v1196
        %v1765 = vsel %vm1734, %v1732, %v1198
        %v1766 = vsel %vm1734, %v1733, %v1200
        %vm1767 = vcmask 326656
        %v1768 = vsel %vm1767, %v1735, %v1239
        %v1769 = vsel %vm1767, %v1736, %v1241
        %v1770 = vsel %vm1767, %v1737, %v1243
        %v1771 = vsel %vm1767, %v1738, %v1245
        %v1772 = vsel %vm1767, %v1739, %v1247
        %v1773 = vsel %vm1767, %v1740, %v1249
        %v1774 = vsel %vm1767, %v1741, %v1251
        %v1775 = vsel %vm1767, %v1742, %v1253
        %v1776 = vsel %vm1767, %v1743, %v1255
        %v1777 = vsel %vm1767, %v1744, %v1257
        %v1778 = vsel %vm1767, %v1745, %v1259
        %v1779 = vsel %vm1767, %v1746, %v1261
        %v1780 = vsel %vm1767, %v1747, %v1263
        %v1781 = vsel %vm1767, %v1748, %v1265
        %v1782 = vsel %vm1767, %v1749, %v1267
        %v1783 = vsel %vm1767, %v1750, %v1269
        %v1784 = vsel %vm1767, %v1751, %v1271
        %v1785 = vsel %vm1767, %v1752, %v1273
        %v1786 = vsel %vm1767, %v1753, %v1275
        %v1787 = vsel %vm1767, %v1754, %v1277
        %v1788 = vsel %vm1767, %v1755, %v1279
        %v1789 = vsel %vm1767, %v1756, %v1281
        %v1790 = vsel %vm1767, %v1757, %v1283
        %v1791 = vsel %vm1767, %v1758, %v1285
        %v1792 = vsel %vm1767, %v1759, %v1287
        %v1793 = vsel %vm1767, %v1760, %v1289
        %v1794 = vsel %vm1767, %v1761, %v1291
        %v1795 = vsel %vm1767, %v1762, %v1293
        %v1796 = vsel %vm1767, %v1763, %v1295
        %v1797 = vsel %vm1767, %v1764, %v1297
        %v1798 = vsel %vm1767, %v1765, %v1299
        %v1799 = vsel %vm1767, %v1766, %v1301
        %vm1800 = vcmask 392192
        %v1801 = vsel %vm1800, %v1768, %v1337
        %v1802 = vsel %vm1800, %v1769, %v1339
        %v1803 = vsel %vm1800, %v1770, %v1341
        %v1804 = vsel %vm1800, %v1771, %v1343
        %v1805 = vsel %vm1800, %v1772, %v1345
        %v1806 = vsel %vm1800, %v1773, %v1347
        %v1807 = vsel %vm1800, %v1774, %v1349
        %v1808 = vsel %vm1800, %v1775, %v1351
        %v1809 = vsel %vm1800, %v1776, %v1353
        %v1810 = vsel %vm1800, %v1777, %v1355
        %v1811 = vsel %vm1800, %v1778, %v1357
        %v1812 = vsel %vm1800, %v1779, %v1359
        %v1813 = vsel %vm1800, %v1780, %v1361
        %v1814 = vsel %vm1800, %v1781, %v1363
        %v1815 = vsel %vm1800, %v1782, %v1365
        %v1816 = vsel %vm1800, %v1783, %v1367
        %v1817 = vsel %vm1800, %v1784, %v1369
        %v1818 = vsel %vm1800, %v1785, %v1371
        %v1819 = vsel %vm1800, %v1786, %v1373
        %v1820 = vsel %vm1800, %v1787, %v1375
        %v1821 = vsel %vm1800, %v1788, %v1377
        %v1822 = vsel %vm1800, %v1789, %v1379
        %v1823 = vsel %vm1800, %v1790, %v1381
        %v1824 = vsel %vm1800, %v1791, %v1383
        %v1825 = vsel %vm1800, %v1792, %v1385
        %v1826 = vsel %vm1800, %v1793, %v1387
        %v1827 = vsel %vm1800, %v1794, %v1389
        %v1828 = vsel %vm1800, %v1795, %v1391
        %v1829 = vsel %vm1800, %v1796, %v1393
        %v1830 = vsel %vm1800, %v1797, %v1395
        %v1831 = vsel %vm1800, %v1798, %v1397
        %v1832 = vsel %vm1800, %v1799, %v1399
        %vm1833 = vcmask 457728
        %v1834 = vsel %vm1833, %v1801, %v1439
        %v1835 = vsel %vm1833, %v1802, %v1441
        %v1836 = vsel %vm1833, %v1803, %v1443
        %v1837 = vsel %vm1833, %v1804, %v1445
        %v1838 = vsel %vm1833, %v1805, %v1447
        %v1839 = vsel %vm1833, %v1806, %v1449
        %v1840 = vsel %vm1833, %v1807, %v1451
        %v1841 = vsel %vm1833, %v1808, %v1453
        %v1842 = vsel %vm1833, %v1809, %v1455
        %v1843 = vsel %vm1833, %v1810, %v1457
        %v1844 = vsel %vm1833, %v1811, %v1459
        %v1845 = vsel %vm1833, %v1812, %v1461
        %v1846 = vsel %vm1833, %v1813, %v1463
        %v1847 = vsel %vm1833, %v1814, %v1465
        %v1848 = vsel %vm1833, %v1815, %v1467
        %v1849 = vsel %vm1833, %v1816, %v1469
        %v1850 = vsel %vm1833, %v1817, %v1471
        %v1851 = vsel %vm1833, %v1818, %v1473
        %v1852 = vsel %vm1833, %v1819, %v1475
        %v1853 = vsel %vm1833, %v1820, %v1477
        %v1854 = vsel %vm1833, %v1821, %v1479
        %v1855 = vsel %vm1833, %v1822, %v1481
        %v1856 = vsel %vm1833, %v1823, %v1483
        %v1857 = vsel %vm1833, %v1824, %v1485
        %v1858 = vsel %vm1833, %v1825, %v1487
        %v1859 = vsel %vm1833, %v1826, %v1489
        %v1860 = vsel %vm1833, %v1827, %v1491
        %v1861 = vsel %vm1833, %v1828, %v1493
        %v1862 = vsel %vm1833, %v1829, %v1495
        %v1863 = vsel %vm1833, %v1830, %v1497
        %v1864 = vsel %vm1833, %v1831, %v1499
        %v1865 = vsel %vm1833, %v1832, %v1501
        %vm1866 = vcmask 523264
        %v1867 = vsel %vm1866, %v1834, %v1540
        %v1868 = vsel %vm1866, %v1835, %v1542
        %v1869 = vsel %vm1866, %v1836, %v1544
        %v1870 = vsel %vm1866, %v1837, %v1546
        %v1871 = vsel %vm1866, %v1838, %v1548
        %v1872 = vsel %vm1866, %v1839, %v1550
        %v1873 = vsel %vm1866, %v1840, %v1552
        %v1874 = vsel %vm1866, %v1841, %v1554
        %v1875 = vsel %vm1866, %v1842, %v1556
        %v1876 = vsel %vm1866, %v1843, %v1558
        %v1877 = vsel %vm1866, %v1844, %v1560
        %v1878 = vsel %vm1866, %v1845, %v1562
        %v1879 = vsel %vm1866, %v1846, %v1564
        %v1880 = vsel %vm1866, %v1847, %v1566
        %v1881 = vsel %vm1866, %v1848, %v1568
        %v1882 = vsel %vm1866, %v1849, %v1570
        %v1883 = vsel %vm1866, %v1850, %v1572
        %v1884 = vsel %vm1866, %v1851, %v1574
        %v1885 = vsel %vm1866, %v1852, %v1576
        %v1886 = vsel %vm1866, %v1853, %v1578
        %v1887 = vsel %vm1866, %v1854, %v1580
        %v1888 = vsel %vm1866, %v1855, %v1582
        %v1889 = vsel %vm1866, %v1856, %v1584
        %v1890 = vsel %vm1866, %v1857, %v1586
        %v1891 = vsel %vm1866, %v1858, %v1588
        %v1892 = vsel %vm1866, %v1859, %v1590
        %v1893 = vsel %vm1866, %v1860, %v1592
        %v1894 = vsel %vm1866, %v1861, %v1594
        %v1895 = vsel %vm1866, %v1862, %v1596
        %v1896 = vsel %vm1866, %v1863, %v1598
        %v1897 = vsel %vm1866, %v1864, %v1600
        %v1898 = vsel %vm1866, %v1865, %v1602
        %v1899 = vld [vmem:[%s1] sm:$0xff]
        %v1900 = vld [vmem:[%s1 + $0x8] sm:$0xff]
        %v1901 = vld [vmem:[%s1 + $0x10] sm:$0xff]
        %v1902 = vld [vmem:[%s1 + $0x18] sm:$0xff]
        %v1903 = vld [vmem:[%s1 + $0x20] sm:$0xff]
        %v1904 = vld [vmem:[%s1 + $0x28] sm:$0xff]
        %v1905 = vld [vmem:[%s1 + $0x30] sm:$0xff]
        %v1906 = vld [vmem:[%s1 + $0x38] sm:$0xff]
        %v1907 = vld [vmem:[%s1 + $0x40] sm:$0xff]
        %v1908 = vld [vmem:[%s2] sm:$0x1]
        %v1910 = vlaneseq
        %v1911 = vshrl.u32 %v1910, 7
        %v1912 = vsub.s32 0, %v1911
        %v1913 = vrot.slane %v1908, %v1912
        %vm1915 = vcmask 588800
        %v1917 = vsel %vm1915, %v1867, 0
        %v1920 = vsel %vm1915, %v1868, 0
        %v1923 = vsel %vm1915, %v1869, 0
        %v1926 = vsel %vm1915, %v1870, 0
        %v1929 = vsel %vm1915, %v1871, 0
        %v1932 = vsel %vm1915, %v1872, 0
        %v1935 = vsel %vm1915, %v1873, 0
        %v1938 = vsel %vm1915, %v1874, 0
        %v1941 = vsel %vm1915, %v1875, 0
        %v1944 = vsel %vm1915, %v1876, 0
        %v1947 = vsel %vm1915, %v1877, 0
        %v1950 = vsel %vm1915, %v1878, 0
        %v1953 = vsel %vm1915, %v1879, 0
        %v1956 = vsel %vm1915, %v1880, 0
        %v1959 = vsel %vm1915, %v1881, 0
        %v1962 = vsel %vm1915, %v1882, 0
        %v1965 = vsel %vm1915, %v1883, 0
        %v1968 = vsel %vm1915, %v1884, 0
        %v1971 = vsel %vm1915, %v1885, 0
        %v1974 = vsel %vm1915, %v1886, 0
        %v1977 = vsel %vm1915, %v1887, 0
        %v1980 = vsel %vm1915, %v1888, 0
        %v1983 = vsel %vm1915, %v1889, 0
        %v1986 = vsel %vm1915, %v1890, 0
        %v1989 = vsel %vm1915, %v1891, 0
        %v1992 = vsel %vm1915, %v1892, 0
        %v1995 = vsel %vm1915, %v1893, 0
        %v1998 = vsel %vm1915, %v1894, 0
        %v2001 = vsel %vm1915, %v1895, 0
        %v2004 = vsel %vm1915, %v1896, 0
        %v2007 = vsel %vm1915, %v1897, 0
        %v2010 = vsel %vm1915, %v1898, 0
        %2012 = vmatprep.subr.mxu0 0.0
        %2013 = vmatpush1.msra.mxu0 %v1899
        %2014 = vmatprep.subr.mxu0 0.0
        %2015 = vmatpush1.msra.mxu0 %v1900
        %2016 = vmatprep.subr.mxu0 0.0
        %2017 = vmatpush1.msra.mxu0 %v1901
        %2018 = vmatprep.subr.mxu0 0.0
        %2019 = vmatpush1.msra.mxu0 %v1902
        %2020 = vmatprep.subr.mxu0 0.0
        %2021 = vmatpush1.msra.mxu0 %v1903
        %2022 = vmatprep.subr.mxu0 0.0
        %2023 = vmatpush1.msra.mxu0 %v1904
        %2024 = vmatprep.subr.mxu0 0.0
        %2025 = vmatpush1.msra.mxu0 %v1905
        %2026 = vmatprep.subr.mxu0 0.0
        %2027 = vmatpush1.msra.mxu0 %v1906
        %2028 = vmatprep.subr.mxu0 0.0
        %2029 = vmatpush1.msra.mxu0 %v1907
        %2030 = vmatprep.subr.mxu0 0.0
        %2031 = vmatpush1.msra.mxu0 0.0
        %2032 = vmatprep.subr.mxu0 0.0
        %2033 = vmatpush1.msra.mxu0 0.0
        %2034 = vmatprep.subr.mxu0 0.0
        %2035 = vmatpush1.msra.mxu0 0.0
        %2036 = vmatprep.subr.mxu0 0.0
        %2037 = vmatpush1.msra.mxu0 0.0
        %2038 = vmatprep.subr.mxu0 0.0
        %2039 = vmatpush1.msra.mxu0 0.0
        %2040 = vmatprep.subr.mxu0 0.0
        %2041 = vmatpush1.msra.mxu0 0.0
        %2042 = vmatprep.subr.mxu0 0.0
        %2043 = vmatpush1.msra.mxu0 0.0
        %2044 = vmatprep.subr.mxu0 0.0
        %2045 = vmatpush1.msra.mxu0 0.0
        %2046 = vmatprep.subr.mxu0 0.0
        %2047 = vmatpush1.msra.mxu0 0.0
        %2048 = vmatprep.subr.mxu0 0.0
        %2049 = vmatpush1.msra.mxu0 0.0
        %2050 = vmatprep.subr.mxu0 0.0
        %2051 = vmatpush1.msra.mxu0 0.0
        %2052 = vmatprep.subr.mxu0 0.0
        %2053 = vmatpush1.msra.mxu0 0.0
        %2054 = vmatprep.subr.mxu0 0.0
        %2055 = vmatpush1.msra.mxu0 0.0
        %2056 = vmatprep.subr.mxu0 0.0
        %2057 = vmatpush1.msra.mxu0 0.0
        %2058 = vmatprep.subr.mxu0 0.0
        %2059 = vmatpush1.msra.mxu0 0.0
        %2060 = vmatprep.subr.mxu0 0.0
        %2061 = vmatpush1.msra.mxu0 0.0
        %2062 = vmatprep.subr.mxu0 0.0
        %2063 = vmatpush1.msra.mxu0 0.0
        %2064 = vmatprep.subr.mxu0 0.0
        %2065 = vmatpush1.msra.mxu0 0.0
        %2066 = vmatprep.subr.mxu0 0.0
        %2067 = vmatpush1.msra.mxu0 0.0
        %2068 = vmatprep.subr.mxu0 0.0
        %2069 = vmatpush1.msra.mxu0 0.0
        %2070 = vmatprep.subr.mxu0 0.0
        %2071 = vmatpush1.msra.mxu0 0.0
        %2072 = vmatprep.subr.mxu0 0.0
        %2073 = vmatpush1.msra.mxu0 0.0
        %2074 = vmatprep.subr.mxu0 0.0
        %2075 = vmatpush1.msra.mxu0 0.0
        %2076 = vmatprep.mubr.f32.mxu0 0.0
        %2077 = vmatmul.mubr.f32.gmra.mrb[0].mxu0 %v1917
        %v2078 = vpop.f32.mrb[0].mxu0
        %v2079 = vadd.f32 %v1913, %v2078
        %v2080 = vpop.f32.mrb[0].mxu0
        %2081 = vmatprep.mubr.f32.mxu0 0.0
        %2082 = vmatmul.mubr.f32.gmra.mrb[0].mxu0 %v1920
        %v2083 = vpop.f32.mrb[0].mxu0
        %v2084 = vadd.f32 %v1913, %v2083
        %v2085 = vpop.f32.mrb[0].mxu0
        %2086 = vmatprep.mubr.f32.mxu0 0.0
        %2087 = vmatmul.mubr.f32.gmra.mrb[0].mxu0 %v1923
        %v2088 = vpop.f32.mrb[0].mxu0
        %v2089 = vadd.f32 %v1913, %v2088
        %v2090 = vpop.f32.mrb[0].mxu0
        %2091 = vmatprep.mubr.f32.mxu0 0.0
        %2092 = vmatmul.mubr.f32.gmra.mrb[0].mxu0 %v1926
        %v2093 = vpop.f32.mrb[0].mxu0
        %v2094 = vadd.f32 %v1913, %v2093
        %v2095 = vpop.f32.mrb[0].mxu0
        %2096 = vmatprep.mubr.f32.mxu0 0.0
        %2097 = vmatmul.mubr.f32.gmra.mrb[0].mxu0 %v1929
        %v2098 = vpop.f32.mrb[0].mxu0
        %v2099 = vadd.f32 %v1913, %v2098
        %v2100 = vpop.f32.mrb[0].mxu0
        %2101 = vmatprep.mubr.f32.mxu0 0.0
        %2102 = vmatmul.mubr.f32.gmra.mrb[0].mxu0 %v1932
        %v2103 = vpop.f32.mrb[0].mxu0
        %v2104 = vadd.f32 %v1913, %v2103
        %v2105 = vpop.f32.mrb[0].mxu0
        %2106 = vmatprep.mubr.f32.mxu0 0.0
        %2107 = vmatmul.mubr.f32.gmra.mrb[0].mxu0 %v1935
        %v2108 = vpop.f32.mrb[0].mxu0
        %v2109 = vadd.f32 %v1913, %v2108
        %v2110 = vpop.f32.mrb[0].mxu0
        %2111 = vmatprep.mubr.f32.mxu0 0.0
        %2112 = vmatmul.mubr.f32.gmra.mrb[0].mxu0 %v1938
        %v2113 = vpop.f32.mrb[0].mxu0
        %v2114 = vadd.f32 %v1913, %v2113
        %v2115 = vpop.f32.mrb[0].mxu0
        %2116 = vmatprep.mubr.f32.mxu0 0.0
        %2117 = vmatmul.mubr.f32.gmra.mrb[0].mxu0 %v1941
        %v2118 = vpop.f32.mrb[0].mxu0
        %v2119 = vadd.f32 %v1913, %v2118
        %v2120 = vpop.f32.mrb[0].mxu0
        %2121 = vmatprep.mubr.f32.mxu0 0.0
        %2122 = vmatmul.mubr.f32.gmra.mrb[0].mxu0 %v1944
        %v2123 = vpop.f32.mrb[0].mxu0
        %v2124 = vadd.f32 %v1913, %v2123
        %v2125 = vpop.f32.mrb[0].mxu0
        %2126 = vmatprep.mubr.f32.mxu0 0.0
        %2127 = vmatmul.mubr.f32.gmra.mrb[0].mxu0 %v1947
        %v2128 = vpop.f32.mrb[0].mxu0
        %v2129 = vadd.f32 %v1913, %v2128
        %v2130 = vpop.f32.mrb[0].mxu0
        %2131 = vmatprep.mubr.f32.mxu0 0.0
        %2132 = vmatmul.mubr.f32.gmra.mrb[0].mxu0 %v1950
        %v2133 = vpop.f32.mrb[0].mxu0
        %v2134 = vadd.f32 %v1913, %v2133
        %v2135 = vpop.f32.mrb[0].mxu0
        %2136 = vmatprep.mubr.f32.mxu0 0.0
        %2137 = vmatmul.mubr.f32.gmra.mrb[0].mxu0 %v1953
        %v2138 = vpop.f32.mrb[0].mxu0
        %v2139 = vadd.f32 %v1913, %v2138
        %v2140 = vpop.f32.mrb[0].mxu0
        %2141 = vmatprep.mubr.f32.mxu0 0.0
        %2142 = vmatmul.mubr.f32.gmra.mrb[0].mxu0 %v1956
        %v2143 = vpop.f32.mrb[0].mxu0
        %v2144 = vadd.f32 %v1913, %v2143
        %v2145 = vpop.f32.mrb[0].mxu0
        %2146 = vmatprep.mubr.f32.mxu0 0.0
        %2147 = vmatmul.mubr.f32.gmra.mrb[0].mxu0 %v1959
        %v2148 = vpop.f32.mrb[0].mxu0
        %v2149 = vadd.f32 %v1913, %v2148
        %v2150 = vpop.f32.mrb[0].mxu0
        %2151 = vmatprep.mubr.f32.mxu0 0.0
        %2152 = vmatmul.mubr.f32.gmra.mrb[0].mxu0 %v1962
        %v2153 = vpop.f32.mrb[0].mxu0
        %v2154 = vadd.f32 %v1913, %v2153
        %v2155 = vpop.f32.mrb[0].mxu0
        %2156 = vmatprep.mubr.f32.mxu0 0.0
        %2157 = vmatmul.mubr.f32.gmra.mrb[0].mxu0 %v1965
        %v2158 = vpop.f32.mrb[0].mxu0
        %v2159 = vadd.f32 %v1913, %v2158
        %v2160 = vpop.f32.mrb[0].mxu0
        %2161 = vmatprep.mubr.f32.mxu0 0.0
        %2162 = vmatmul.mubr.f32.gmra.mrb[0].mxu0 %v1968
        %v2163 = vpop.f32.mrb[0].mxu0
        %v2164 = vadd.f32 %v1913, %v2163
        %v2165 = vpop.f32.mrb[0].mxu0
        %2166 = vmatprep.mubr.f32.mxu0 0.0
        %2167 = vmatmul.mubr.f32.gmra.mrb[0].mxu0 %v1971
        %v2168 = vpop.f32.mrb[0].mxu0
        %v2169 = vadd.f32 %v1913, %v2168
        %v2170 = vpop.f32.mrb[0].mxu0
        %2171 = vmatprep.mubr.f32.mxu0 0.0
        %2172 = vmatmul.mubr.f32.gmra.mrb[0].mxu0 %v1974
        %v2173 = vpop.f32.mrb[0].mxu0
        %v2174 = vadd.f32 %v1913, %v2173
        %v2175 = vpop.f32.mrb[0].mxu0
        %2176 = vmatprep.mubr.f32.mxu0 0.0
        %2177 = vmatmul.mubr.f32.gmra.mrb[0].mxu0 %v1977
        %v2178 = vpop.f32.mrb[0].mxu0
        %v2179 = vadd.f32 %v1913, %v2178
        %v2180 = vpop.f32.mrb[0].mxu0
        %2181 = vmatprep.mubr.f32.mxu0 0.0
        %2182 = vmatmul.mubr.f32.gmra.mrb[0].mxu0 %v1980
        %v2183 = vpop.f32.mrb[0].mxu0
        %v2184 = vadd.f32 %v1913, %v2183
        %v2185 = vpop.f32.mrb[0].mxu0
        %2186 = vmatprep.mubr.f32.mxu0 0.0
        %2187 = vmatmul.mubr.f32.gmra.mrb[0].mxu0 %v1983
        %v2188 = vpop.f32.mrb[0].mxu0
        %v2189 = vadd.f32 %v1913, %v2188
        %v2190 = vpop.f32.mrb[0].mxu0
        %2191 = vmatprep.mubr.f32.mxu0 0.0
        %2192 = vmatmul.mubr.f32.gmra.mrb[0].mxu0 %v1986
        %v2193 = vpop.f32.mrb[0].mxu0
        %v2194 = vadd.f32 %v1913, %v2193
        %v2195 = vpop.f32.mrb[0].mxu0
        %2196 = vmatprep.mubr.f32.mxu0 0.0
        %2197 = vmatmul.mubr.f32.gmra.mrb[0].mxu0 %v1989
        %v2198 = vpop.f32.mrb[0].mxu0
        %v2199 = vadd.f32 %v1913, %v2198
        %v2200 = vpop.f32.mrb[0].mxu0
        %2201 = vmatprep.mubr.f32.mxu0 0.0
        %2202 = vmatmul.mubr.f32.gmra.mrb[0].mxu0 %v1992
        %v2203 = vpop.f32.mrb[0].mxu0
        %v2204 = vadd.f32 %v1913, %v2203
        %v2205 = vpop.f32.mrb[0].mxu0
        %2206 = vmatprep.mubr.f32.mxu0 0.0
        %2207 = vmatmul.mubr.f32.gmra.mrb[0].mxu0 %v1995
        %v2208 = vpop.f32.mrb[0].mxu0
        %v2209 = vadd.f32 %v1913, %v2208
        %v2210 = vpop.f32.mrb[0].mxu0
        %2211 = vmatprep.mubr.f32.mxu0 0.0
        %2212 = vmatmul.mubr.f32.gmra.mrb[0].mxu0 %v1998
        %v2213 = vpop.f32.mrb[0].mxu0
        %v2214 = vadd.f32 %v1913, %v2213
        %v2215 = vpop.f32.mrb[0].mxu0
        %2216 = vmatprep.mubr.f32.mxu0 0.0
        %2217 = vmatmul.mubr.f32.gmra.mrb[0].mxu0 %v2001
        %v2218 = vpop.f32.mrb[0].mxu0
        %v2219 = vadd.f32 %v1913, %v2218
        %v2220 = vpop.f32.mrb[0].mxu0
        %2221 = vmatprep.mubr.f32.mxu0 0.0
        %2222 = vmatmul.mubr.f32.gmra.mrb[0].mxu0 %v2004
        %v2223 = vpop.f32.mrb[0].mxu0
        %v2224 = vadd.f32 %v1913, %v2223
        %v2225 = vpop.f32.mrb[0].mxu0
        %2226 = vmatprep.mubr.f32.mxu0 0.0
        %2227 = vmatmul.mubr.f32.gmra.mrb[0].mxu0 %v2007
        %v2228 = vpop.f32.mrb[0].mxu0
        %v2229 = vadd.f32 %v1913, %v2228
        %v2230 = vpop.f32.mrb[0].mxu0
        %2231 = vmatprep.mubr.f32.mxu0 0.0
        %2232 = vmatmul.mubr.f32.gmra.mrb[0].mxu0 %v2010
        %v2233 = vpop.f32.mrb[0].mxu0
        %v2234 = vadd.f32 %v1913, %v2233
        %v2235 = vpop.f32.mrb[0].mxu0
        %2236 = vdwg.mxu0
        %2237 = vst [vmem:[%s187] sm:$0xff] %v2079
        %2238 = vst [vmem:[%s187 + $0x8] sm:$0xff] %v2084
        %2239 = vst [vmem:[%s187 + $0x10] sm:$0xff] %v2089
        %2240 = vst [vmem:[%s187 + $0x18] sm:$0xff] %v2094
        %2241 = vst [vmem:[%s187 + $0x20] sm:$0xff] %v2099
        %2242 = vst [vmem:[%s187 + $0x28] sm:$0xff] %v2104
        %2243 = vst [vmem:[%s187 + $0x30] sm:$0xff] %v2109
        %2244 = vst [vmem:[%s187 + $0x38] sm:$0xff] %v2114
        %2245 = vst [vmem:[%s187 + $0x40] sm:$0xff] %v2119
        %2246 = vst [vmem:[%s187 + $0x48] sm:$0xff] %v2124
        %2247 = vst [vmem:[%s187 + $0x50] sm:$0xff] %v2129
        %2248 = vst [vmem:[%s187 + $0x58] sm:$0xff] %v2134
        %2249 = vst [vmem:[%s187 + $0x60] sm:$0xff] %v2139
        %2250 = vst [vmem:[%s187 + $0x68] sm:$0xff] %v2144
        %2251 = vst [vmem:[%s187 + $0x70] sm:$0xff] %v2149
        %2252 = vst [vmem:[%s187 + $0x78] sm:$0xff] %v2154
        %2253 = vst [vmem:[%s187 + $0x80] sm:$0xff] %v2159
        %2254 = vst [vmem:[%s187 + $0x88] sm:$0xff] %v2164
        %2255 = vst [vmem:[%s187 + $0x90] sm:$0xff] %v2169
        %2256 = vst [vmem:[%s187 + $0x98] sm:$0xff] %v2174
        %2257 = vst [vmem:[%s187 + $0xa0] sm:$0xff] %v2179
        %2258 = vst [vmem:[%s187 + $0xa8] sm:$0xff] %v2184
        %2259 = vst [vmem:[%s187 + $0xb0] sm:$0xff] %v2189
        %2260 = vst [vmem:[%s187 + $0xb8] sm:$0xff] %v2194
        %2261 = vst [vmem:[%s187 + $0xc0] sm:$0xff] %v2199
        %2262 = vst [vmem:[%s187 + $0xc8] sm:$0xff] %v2204
        %2263 = vst [vmem:[%s187 + $0xd0] sm:$0xff] %v2209
        %2264 = vst [vmem:[%s187 + $0xd8] sm:$0xff] %v2214
        %2265 = vst [vmem:[%s187 + $0xe0] sm:$0xff] %v2219
        %2266 = vst [vmem:[%s187 + $0xe8] sm:$0xff] %v2224
        %2267 = vst [vmem:[%s187 + $0xf0] sm:$0xff] %v2229
        %2268 = vst [vmem:[%s187 + $0xf8] sm:$0xff] %v2234
        %s2269 = sand.u32 %s109, 1
        %s2270 = scalar_lea.sflag [#allocation3], %s2269
        %s2271 = sand.u32 %s109, 1
        %s2272 = smul.addr %s2271, 256
        %s2273 = scalar_lea.vmem [#allocation2], %s2272
        // Predicated region
        $region33: #{tpu_custom_call.1} parent=31 // pred_check
          %p2274 = pneg %p119
        $region34: #{tpu_custom_call.1} parent=31 // pred_check_branch
          %2276 = sbr.rel (%p2274) target = $region36
        $region35: #{tpu_custom_call.1} parent=31 // pred_region
          %s2277 = smul.u32 16, %s22
          %s2279 = ssub.s32 4096, 4096
          %2280 = vsyncadd %s2270, %s2279
          %s2281 = smul.addr %s2277, 2
          %s2282 = smul.addr %s21, 32
          %s2283 = sadd.s32 %s2281, %s2282
          %s2284 = smul.addr %s2283, 128
          %s2285 = scalar_lea.hbm %s3, %s2284
          %s2286 = sshll.u32 %s2273, 4
          %s2287 = int_to_ptr.vmem [resolvable:$true] %s2286
          %2292 = dma.vmem_to_hbm [thread:$0]  %s2287, 4096, %s2285, %s2270, 128, 128, 8
        $region36: #{tpu_custom_call.1} parent=31 // pred_fallthru
          _
      $region32: #{tpu_custom_call.1} parent=5 // pred_fallthru
        _
      %p2293 = scmp.le.s32.totalorder 2, %s12
      // Predicated region
      $region37: #{tpu_custom_call.1} parent=5 // pred_check
        %p2294 = pneg %p2293
      $region38: #{tpu_custom_call.1} parent=5 // pred_check_branch
        %2296 = sbr.rel (%p2294) target = $region40
      $region39: #{tpu_custom_call.1} parent=5 // pred_region
        %s2297 = ssub.s32 %s12, 2
        // Predicated region
        $region41: #{tpu_custom_call.1} parent=39 // pred_check
          %p2298 = pneg %p125
        $region42: #{tpu_custom_call.1} parent=39 // pred_check_branch
          %2300 = sbr.rel (%p2298) target = $region44
        $region43: #{tpu_custom_call.1} parent=39 // pred_region
          %s2301 = sand.u32 %s110, 1
          %s2302 = scalar_lea.sflag [#allocation3], %s2301
          %s2303 = sand.u32 %s110, 1
          %s2304 = smul.addr %s2303, 256
          %s2305 = scalar_lea.vmem [#allocation2], %s2304
          %2306 = dma.done %s2302, 4096
        $region44: #{tpu_custom_call.1} parent=39 // pred_fallthru
          _
      $region40: #{tpu_custom_call.1} parent=5 // pred_fallthru
        _
    $region6: #{tpu_custom_call.1} parent=1 // loop_footer
      %s16 = sadd.s32 1, %s12
    $region7: #{tpu_custom_call.1} parent=1 // loop_footer_branch
      %11 = sbr.rel target = $region3
    $region8: #{tpu_custom_call.1} parent=1 // loop_exit
      _
    %2307 = vsyncpa [#allocation3], 1
    %s2308 = scalar_lea.sflag [#allocation3], 1
    %2309 = vsyncpa %s2308, 1

</llo_original>
